<compile_context>
chip_gen: v7x
topology: tpu7x:2x2x1
jax: 0.10.0
libtpu: 0.0.40
codegen_flags: <defaults>
</compile_context>

<pallas_src>
import jax
import jax.numpy as jnp
from jax.experimental import pallas as pl
from jax.experimental.pallas import tpu as pltpu


# ----------------------------- fused Pallas kernel ---------------------------

def _dblock_kernel(x_ref, w1_ref, b1_ref, w2_ref, wsc_ref, b2_ref, o_ref):
    """Processes one batch image per grid step.

    x_ref  : (H, W*Cin)         lane-dense input slab
    w1_ref : (3, W*Cin, W*Ch)   conv1 banded weight, one slice per kernel row
    b1_ref : (1, W*Ch)          conv1 bias tiled per w block
    w2_ref : (3, W*Ch, W*Cout)  conv2 banded weight
    wsc_ref: (W*Cin, W*Cout)    1x1 shortcut conv as block-diagonal weight
    b2_ref : (1, W*Cout)        conv2 + shortcut bias tiled per w block
    o_ref  : (H, W*Cout)        lane-dense output slab
    """
    x = x_ref[...]
    H = x.shape[0]
    f32 = jnp.float32

    # Row-shift matrices: (s_dn @ a)[h] = a[h-1], (s_up @ a)[h] = a[h+1], with
    # zero rows at the image boundary (height-1 zero padding for free).
    # Realized as tiny (H,H) MXU matmuls: avoids all sublane relayout / rotate
    # / mask work, and the MXU has plenty of slack at these sizes.
    # TODO(synk): at large H replace with pltpu.roll(axis=0) + a one-row mask.
    r = jax.lax.broadcasted_iota(jnp.int32, (H, H), 0)
    c = jax.lax.broadcasted_iota(jnp.int32, (H, H), 1)
    s_dn = (c == r - 1).astype(f32)
    s_up = (c == r + 1).astype(f32)

    def band_conv(a, w_ref):
        # 3x3 conv (pad=1) on a lane-dense (H, W*C) slab: one matmul per kernel
        # row kh against a banded weight that realizes the kw taps and the
        # width-1 zero padding inside the MXU.
        acc = jnp.dot(a, w_ref[1], preferred_element_type=f32)
        acc += jnp.dot(jnp.dot(s_dn, a, preferred_element_type=f32), w_ref[0],
                       preferred_element_type=f32)
        acc += jnp.dot(jnp.dot(s_up, a, preferred_element_type=f32), w_ref[2],
                       preferred_element_type=f32)
        return acc

    # conv1 (3x3, pad=1) + bias + ReLU -- h1 never leaves vregs.
    h1 = jnp.maximum(band_conv(x, w1_ref) + b1_ref[...], 0.0)

    # 1x1 shortcut seeds the conv2 accumulator (fused residual + both biases),
    # then conv2 (3x3, pad=1) accumulates on top -> one lane-dense store.
    acc2 = jnp.dot(x, wsc_ref[...], preferred_element_type=f32) + b2_ref[...]
    acc2 += band_conv(h1, w2_ref)

    o_ref[...] = acc2.astype(o_ref.dtype)


# --------------------------- weight preparation (glue) ------------------------

def _banded_weights(w_hwio, width):
    """(3,3,Cin,Cout) HWIO conv weight -> (3, width*Cin, width*Cout) banded.

    For kernel row kh, block (wi, wo) of the result is w_hwio[kh, wi-wo+1]
    (zero outside the 3-tap band), so (row-shifted slab) @ result[kh] performs
    the kw taps and the width-1 zero padding in a single matmul.
    """
    cin, cout = w_hwio.shape[2], w_hwio.shape[3]
    out = []
    for kh in range(3):
        band = jnp.zeros((width * cin, width * cout), w_hwio.dtype)
        for kw in range(3):
            sel = jnp.eye(width, width, k=1 - kw, dtype=w_hwio.dtype)
            band = band + jnp.kron(sel, w_hwio[kh, kw])
        out.append(band)
    return jnp.stack(out)


def _spectral_normalize(w, u, eps=1e-12):
    """One power-iteration step (num_svs=1, num_itrs=1), matching SN.W_()."""
    W_mat = w.reshape(w.shape[0], -1)                      # (out, in*kh*kw)
    v = u @ W_mat
    v = v / jnp.maximum(jnp.linalg.norm(v), eps)           # F.normalize
    u_new = v @ W_mat.T
    u_new = u_new / jnp.maximum(jnp.linalg.norm(u_new), eps)
    sv = jnp.squeeze(v @ W_mat.T @ u_new.T)
    # TODO(synk): PyTorch SNConv2d also writes the updated u / sv back into
    # persistent buffers in training mode; kept stateless here (forward output
    # of this call is unaffected).
    return w / sv


# ------------------------------ DBlock forward --------------------------------

@jax.jit
def dblock_forward(x_nchw, params):
    B, Cin, H, W = x_nchw.shape

    w1 = _spectral_normalize(params["w1"], params["u1"])     # (Ch, Cin, 3, 3)
    w2 = _spectral_normalize(params["w2"], params["u2"])     # (Cout, Ch, 3, 3)
    wsc = _spectral_normalize(params["wsc"], params["usc"])  # (Cout, Cin, 1, 1)
    Ch, Cout = w1.shape[0], w2.shape[0]

    # NCHW -> NHWC -> per-image lane-dense slab (B, H, W*Cin).
    # TODO(synk): at production sizes accept NHWC / the slab directly to avoid
    # this extra transpose pass over the activation.
    x_slab = jnp.transpose(x_nchw, (0, 2, 3, 1)).astype(jnp.float32)
    x_slab = x_slab.reshape(B, H, W * Cin)

    # OIHW -> HWIO, then expand to banded / block-diagonal matmul weights.
    w1b = _banded_weights(jnp.transpose(w1, (2, 3, 1, 0)), W)   # (3, W*Cin, W*Ch)
    w2b = _banded_weights(jnp.transpose(w2, (2, 3, 1, 0)), W)   # (3, W*Ch, W*Cout)
    wsc_k = jnp.kron(jnp.eye(W, dtype=jnp.float32),
                     jnp.transpose(wsc[:, :, 0, 0]))            # (W*Cin, W*Cout)

    b1_lane = jnp.tile(params["b1"], W).reshape(1, W * Ch)
    b2sc_lane = jnp.tile(params["b2"] + params["bsc"], W).reshape(1, W * Cout)

    macs_per_img = (3 * H * (W * Cin) * (W * Ch)         # conv1 banded matmuls
                    + 3 * H * (W * Ch) * (W * Cout)      # conv2 banded matmuls
                    + H * (W * Cin) * (W * Cout)         # 1x1 shortcut
                    + 2 * H * H * (W * Cin)              # row shifts of x
                    + 2 * H * H * (W * Ch))              # row shifts of h1
    cost = pl.CostEstimate(
        flops=2 * B * macs_per_img,
        transcendentals=0,
        bytes_accessed=4 * (x_slab.size + w1b.size + w2b.size + wsc_k.size
                            + b1_lane.size + b2sc_lane.size + B * H * W * Cout))

    out_slab = pl.pallas_call(
        _dblock_kernel,
        out_shape=jax.ShapeDtypeStruct((B, H, W * Cout), jnp.float32),
        grid_spec=pltpu.PrefetchScalarGridSpec(
            num_scalar_prefetch=0,
            grid=(B,),
            in_specs=[
                pl.BlockSpec((None, H, W * Cin), lambda b: (b, 0, 0)),
                pl.BlockSpec((3, W * Cin, W * Ch), lambda b: (0, 0, 0)),
                pl.BlockSpec((1, W * Ch), lambda b: (0, 0)),
                pl.BlockSpec((3, W * Ch, W * Cout), lambda b: (0, 0, 0)),
                pl.BlockSpec((W * Cin, W * Cout), lambda b: (0, 0)),
                pl.BlockSpec((1, W * Cout), lambda b: (0, 0)),
            ],
            out_specs=pl.BlockSpec((None, H, W * Cout), lambda b: (b, 0, 0)),
        ),
        compiler_params=pltpu.CompilerParams(
            dimension_semantics=("parallel",),
            vmem_limit_bytes=16 * 1024 * 1024),
        cost_estimate=cost,
    )(x_slab, w1b, b1_lane, w2b, wsc_k, b2sc_lane)

    out = out_slab.reshape(B, H, W, Cout)       # split of the lane-dense slab
    return jnp.transpose(out, (0, 3, 1, 2))     # back to NCHW


# ------------------------- pure-JAX reference (check) -------------------------

def _conv_ref(x_nchw, w_oihw, b, pad):
    y = jax.lax.conv_general_dilated(
        x_nchw, w_oihw, window_strides=(1, 1),
        padding=((pad, pad), (pad, pad)),
        dimension_numbers=("NCHW", "OIHW", "NCHW"))
    return y + b[None, :, None, None]


def dblock_reference(x_nchw, params):
    w1 = _spectral_normalize(params["w1"], params["u1"])
    w2 = _spectral_normalize(params["w2"], params["u2"])
    wsc = _spectral_normalize(params["wsc"], params["usc"])
    h = _conv_ref(x_nchw, w1, params["b1"], pad=1)
    h = _conv_ref(jnp.maximum(h, 0.0), w2, params["b2"], pad=1)
    sc = _conv_ref(x_nchw, wsc, params["bsc"], pad=0)
    return h + sc


# ----------------------------------- main -------------------------------------

if __name__ == "__main__":
    B, Cin, Cout, H, W = 2, 4, 8, 16, 16
    Ch = Cout  # wide=True

    key = jax.random.PRNGKey(0)
    ks = jax.random.split(key, 10)
    params = {
        "w1": 0.1 * jax.random.normal(ks[0], (Ch, Cin, 3, 3), jnp.float32),
        "b1": 0.1 * jax.random.normal(ks[1], (Ch,), jnp.float32),
        "w2": 0.1 * jax.random.normal(ks[2], (Cout, Ch, 3, 3), jnp.float32),
        "b2": 0.1 * jax.random.normal(ks[3], (Cout,), jnp.float32),
        "wsc": 0.1 * jax.random.normal(ks[4], (Cout, Cin, 1, 1), jnp.float32),
        "bsc": 0.1 * jax.random.normal(ks[5], (Cout,), jnp.float32),
        "u1": jax.random.normal(ks[6], (1, Ch), jnp.float32),    # SN buffers
        "u2": jax.random.normal(ks[7], (1, Cout), jnp.float32),
        "usc": jax.random.normal(ks[8], (1, Cout), jnp.float32),
    }
    x = jax.random.normal(ks[9], (B, Cin, H, W), jnp.float32)

    out = jax.block_until_ready(dblock_forward(x, params))
    ref = jax.block_until_ready(dblock_reference(x, params))

    assert out.shape == (B, Cout, H, W), out.shape
    if not jnp.allclose(out, ref, atol=1e-4, rtol=1e-4):
        raise AssertionError("Pallas DBlock output mismatch vs JAX reference")

    print("KERNEL_OK")
</pallas_src>

<mosaic_0001>
module attributes {stable_mosaic.version = 11 : i64} {
  func.func @_dblock_kernel(%arg0: i32, %arg1: memref<1x16x64xf32, #tpu.memory_space<vmem>>, %arg2: memref<3x64x128xf32, #tpu.memory_space<vmem>>, %arg3: memref<1x128xf32, #tpu.memory_space<vmem>>, %arg4: memref<3x128x128xf32, #tpu.memory_space<vmem>>, %arg5: memref<64x128xf32, #tpu.memory_space<vmem>>, %arg6: memref<1x128xf32, #tpu.memory_space<vmem>>, %arg7: memref<1x16x128xf32, #tpu.memory_space<vmem>>) attributes {dimension_semantics = [#tpu.dimension_semantics<parallel>], iteration_bounds = array<i64: 2>, scalar_prefetch = 0 : i64, scratch_operands = 0 : i64, tpu.core_type = #tpu.core_type<tc>, window_params = [{transform_indices = @transform_0, window_bounds = array<i64: 1, 16, 64>}, {pipeline_mode = #tpu.pipeline_mode<synchronous>, transform_indices = @transform_1, window_bounds = array<i64: 3, 64, 128>}, {pipeline_mode = #tpu.pipeline_mode<synchronous>, transform_indices = @transform_2, window_bounds = array<i64: 1, 128>}, {pipeline_mode = #tpu.pipeline_mode<synchronous>, transform_indices = @transform_3, window_bounds = array<i64: 3, 128, 128>}, {pipeline_mode = #tpu.pipeline_mode<synchronous>, transform_indices = @transform_4, window_bounds = array<i64: 64, 128>}, {pipeline_mode = #tpu.pipeline_mode<synchronous>, transform_indices = @transform_5, window_bounds = array<i64: 1, 128>}, {transform_indices = @transform_6, window_bounds = array<i64: 1, 16, 128>}]} {
    %c0 = arith.constant 0 : index
    %c0_0 = arith.constant 0 : index
    %c0_1 = arith.constant 0 : index
    %0 = vector.load %arg1[%c0, %c0_0, %c0_1] : memref<1x16x64xf32, #tpu.memory_space<vmem>>, vector<1x16x64xf32>
    %1 = vector.shape_cast %0 : vector<1x16x64xf32> to vector<16x64xf32>
    %2 = tpu.iota {dimensions = array<i32: 0>} : vector<16x16xi32>
    %3 = tpu.iota {dimensions = array<i32: 1>} : vector<16x16xi32>
    %c1_i32 = arith.constant 1 : i32
    %4 = vector.broadcast %c1_i32 : i32 to vector<16x16xi32>
    %5 = arith.subi %2, %4 : vector<16x16xi32>
    %6 = arith.cmpi eq, %3, %5 : vector<16x16xi32>
    %7 = arith.extui %6 : vector<16x16xi1> to vector<16x16xi32>
    %8 = arith.sitofp %7 : vector<16x16xi32> to vector<16x16xf32>
    %c1_i32_2 = arith.constant 1 : i32
    %9 = vector.broadcast %c1_i32_2 : i32 to vector<16x16xi32>
    %10 = arith.addi %2, %9 : vector<16x16xi32>
    %11 = arith.cmpi eq, %3, %10 : vector<16x16xi32>
    %12 = arith.extui %11 : vector<16x16xi1> to vector<16x16xi32>
    %13 = arith.sitofp %12 : vector<16x16xi32> to vector<16x16xf32>
    %c1 = arith.constant 1 : index
    %c0_3 = arith.constant 0 : index
    %c0_4 = arith.constant 0 : index
    %14 = vector.load %arg2[%c1, %c0_3, %c0_4] : memref<3x64x128xf32, #tpu.memory_space<vmem>>, vector<1x64x128xf32>
    %15 = vector.shape_cast %14 : vector<1x64x128xf32> to vector<64x128xf32>
    %cst = arith.constant dense<0.000000e+00> : vector<16x128xf32>
    %16 = tpu.matmul %1, %15, %cst {dimension_numbers = #tpu.dot_dimension_numbers<[1], [0], [0], [1], [0, 0, 1, 1], [], []>} : vector<16x64xf32>, vector<64x128xf32>, vector<16x128xf32> -> vector<16x128xf32>
    %cst_5 = arith.constant dense<0.000000e+00> : vector<16x64xf32>
    %17 = tpu.matmul %8, %1, %cst_5 {dimension_numbers = #tpu.dot_dimension_numbers<[1], [0], [0], [1], [0, 0, 1, 1], [], []>} : vector<16x16xf32>, vector<16x64xf32>, vector<16x64xf32> -> vector<16x64xf32>
    %c0_6 = arith.constant 0 : index
    %c0_7 = arith.constant 0 : index
    %c0_8 = arith.constant 0 : index
    %18 = vector.load %arg2[%c0_6, %c0_7, %c0_8] : memref<3x64x128xf32, #tpu.memory_space<vmem>>, vector<1x64x128xf32>
    %19 = vector.shape_cast %18 : vector<1x64x128xf32> to vector<64x128xf32>
    %cst_9 = arith.constant dense<0.000000e+00> : vector<16x128xf32>
    %20 = tpu.matmul %17, %19, %cst_9 {dimension_numbers = #tpu.dot_dimension_numbers<[1], [0], [0], [1], [0, 0, 1, 1], [], []>} : vector<16x64xf32>, vector<64x128xf32>, vector<16x128xf32> -> vector<16x128xf32>
    %21 = arith.addf %16, %20 : vector<16x128xf32>
    %cst_10 = arith.constant dense<0.000000e+00> : vector<16x64xf32>
    %22 = tpu.matmul %13, %1, %cst_10 {dimension_numbers = #tpu.dot_dimension_numbers<[1], [0], [0], [1], [0, 0, 1, 1], [], []>} : vector<16x16xf32>, vector<16x64xf32>, vector<16x64xf32> -> vector<16x64xf32>
    %c2 = arith.constant 2 : index
    %c0_11 = arith.constant 0 : index
    %c0_12 = arith.constant 0 : index
    %23 = vector.load %arg2[%c2, %c0_11, %c0_12] : memref<3x64x128xf32, #tpu.memory_space<vmem>>, vector<1x64x128xf32>
    %24 = vector.shape_cast %23 : vector<1x64x128xf32> to vector<64x128xf32>
    %cst_13 = arith.constant dense<0.000000e+00> : vector<16x128xf32>
    %25 = tpu.matmul %22, %24, %cst_13 {dimension_numbers = #tpu.dot_dimension_numbers<[1], [0], [0], [1], [0, 0, 1, 1], [], []>} : vector<16x64xf32>, vector<64x128xf32>, vector<16x128xf32> -> vector<16x128xf32>
    %26 = arith.addf %21, %25 : vector<16x128xf32>
    %c0_14 = arith.constant 0 : index
    %c0_15 = arith.constant 0 : index
    %27 = vector.load %arg3[%c0_14, %c0_15] : memref<1x128xf32, #tpu.memory_space<vmem>>, vector<1x128xf32>
    %28 = vector.broadcast %27 : vector<1x128xf32> to vector<16x128xf32>
    %29 = arith.addf %26, %28 : vector<16x128xf32>
    %cst_16 = arith.constant 0.000000e+00 : f32
    %30 = vector.broadcast %cst_16 : f32 to vector<16x128xf32>
    %31 = arith.maximumf %29, %30 : vector<16x128xf32>
    %c0_17 = arith.constant 0 : index
    %c0_18 = arith.constant 0 : index
    %32 = vector.load %arg5[%c0_17, %c0_18] : memref<64x128xf32, #tpu.memory_space<vmem>>, vector<64x128xf32>
    %cst_19 = arith.constant dense<0.000000e+00> : vector<16x128xf32>
    %33 = tpu.matmul %1, %32, %cst_19 {dimension_numbers = #tpu.dot_dimension_numbers<[1], [0], [0], [1], [0, 0, 1, 1], [], []>} : vector<16x64xf32>, vector<64x128xf32>, vector<16x128xf32> -> vector<16x128xf32>
    %c0_20 = arith.constant 0 : index
    %c0_21 = arith.constant 0 : index
    %34 = vector.load %arg6[%c0_20, %c0_21] : memref<1x128xf32, #tpu.memory_space<vmem>>, vector<1x128xf32>
    %35 = vector.broadcast %34 : vector<1x128xf32> to vector<16x128xf32>
    %36 = arith.addf %33, %35 : vector<16x128xf32>
    %c1_22 = arith.constant 1 : index
    %c0_23 = arith.constant 0 : index
    %c0_24 = arith.constant 0 : index
    %37 = vector.load %arg4[%c1_22, %c0_23, %c0_24] : memref<3x128x128xf32, #tpu.memory_space<vmem>>, vector<1x128x128xf32>
    %38 = vector.shape_cast %37 : vector<1x128x128xf32> to vector<128x128xf32>
    %cst_25 = arith.constant dense<0.000000e+00> : vector<16x128xf32>
    %39 = tpu.matmul %31, %38, %cst_25 {dimension_numbers = #tpu.dot_dimension_numbers<[1], [0], [0], [1], [0, 0, 1, 1], [], []>} : vector<16x128xf32>, vector<128x128xf32>, vector<16x128xf32> -> vector<16x128xf32>
    %cst_26 = arith.constant dense<0.000000e+00> : vector<16x128xf32>
    %40 = tpu.matmul %8, %31, %cst_26 {dimension_numbers = #tpu.dot_dimension_numbers<[1], [0], [0], [1], [0, 0, 1, 1], [], []>} : vector<16x16xf32>, vector<16x128xf32>, vector<16x128xf32> -> vector<16x128xf32>
    %c0_27 = arith.constant 0 : index
    %c0_28 = arith.constant 0 : index
    %c0_29 = arith.constant 0 : index
    %41 = vector.load %arg4[%c0_27, %c0_28, %c0_29] : memref<3x128x128xf32, #tpu.memory_space<vmem>>, vector<1x128x128xf32>
    %42 = vector.shape_cast %41 : vector<1x128x128xf32> to vector<128x128xf32>
    %cst_30 = arith.constant dense<0.000000e+00> : vector<16x128xf32>
    %43 = tpu.matmul %40, %42, %cst_30 {dimension_numbers = #tpu.dot_dimension_numbers<[1], [0], [0], [1], [0, 0, 1, 1], [], []>} : vector<16x128xf32>, vector<128x128xf32>, vector<16x128xf32> -> vector<16x128xf32>
    %44 = arith.addf %39, %43 : vector<16x128xf32>
    %cst_31 = arith.constant dense<0.000000e+00> : vector<16x128xf32>
    %45 = tpu.matmul %13, %31, %cst_31 {dimension_numbers = #tpu.dot_dimension_numbers<[1], [0], [0], [1], [0, 0, 1, 1], [], []>} : vector<16x16xf32>, vector<16x128xf32>, vector<16x128xf32> -> vector<16x128xf32>
    %c2_32 = arith.constant 2 : index
    %c0_33 = arith.constant 0 : index
    %c0_34 = arith.constant 0 : index
    %46 = vector.load %arg4[%c2_32, %c0_33, %c0_34] : memref<3x128x128xf32, #tpu.memory_space<vmem>>, vector<1x128x128xf32>
    %47 = vector.shape_cast %46 : vector<1x128x128xf32> to vector<128x128xf32>
    %cst_35 = arith.constant dense<0.000000e+00> : vector<16x128xf32>
    %48 = tpu.matmul %45, %47, %cst_35 {dimension_numbers = #tpu.dot_dimension_numbers<[1], [0], [0], [1], [0, 0, 1, 1], [], []>} : vector<16x128xf32>, vector<128x128xf32>, vector<16x128xf32> -> vector<16x128xf32>
    %49 = arith.addf %44, %48 : vector<16x128xf32>
    %50 = arith.addf %36, %49 : vector<16x128xf32>
    %c0_36 = arith.constant 0 : index
    %c0_37 = arith.constant 0 : index
    %c0_38 = arith.constant 0 : index
    %51 = vector.load %arg7[%c0_36, %c0_37, %c0_38] : memref<1x16x128xf32, #tpu.memory_space<vmem>>, vector<1x16x128xf32>
    %52 = vector.shape_cast %51 : vector<1x16x128xf32> to vector<16x128xf32>
    %53 = vector.shape_cast %50 : vector<16x128xf32> to vector<1x16x128xf32>
    tpu.vector_store %arg7[%c0_36, %c0_37, %c0_38], %53 {strides = array<i32>} : memref<1x16x128xf32, #tpu.memory_space<vmem>>, vector<1x16x128xf32>,
    return
  }
  func.func @transform_0(%arg0: i32) -> (i32, i32, i32) {
    %c0_i32 = arith.constant 0 : i32
    %c0_i32_0 = arith.constant 0 : i32
    %c0_i32_1 = arith.constant 0 : i32
    return %arg0, %c0_i32, %c0_i32_0 : i32, i32, i32
  }
  func.func @transform_1(%arg0: i32) -> (i32, i32, i32) {
    %c0_i32 = arith.constant 0 : i32
    %c0_i32_0 = arith.constant 0 : i32
    %c0_i32_1 = arith.constant 0 : i32
    %c0_i32_2 = arith.constant 0 : i32
    return %c0_i32, %c0_i32_0, %c0_i32_1 : i32, i32, i32
  }
  func.func @transform_2(%arg0: i32) -> (i32, i32) {
    %c0_i32 = arith.constant 0 : i32
    %c0_i32_0 = arith.constant 0 : i32
    %c0_i32_1 = arith.constant 0 : i32
    return %c0_i32, %c0_i32_0 : i32, i32
  }
  func.func @transform_3(%arg0: i32) -> (i32, i32, i32) {
    %c0_i32 = arith.constant 0 : i32
    %c0_i32_0 = arith.constant 0 : i32
    %c0_i32_1 = arith.constant 0 : i32
    %c0_i32_2 = arith.constant 0 : i32
    return %c0_i32, %c0_i32_0, %c0_i32_1 : i32, i32, i32
  }
  func.func @transform_4(%arg0: i32) -> (i32, i32) {
    %c0_i32 = arith.constant 0 : i32
    %c0_i32_0 = arith.constant 0 : i32
    %c0_i32_1 = arith.constant 0 : i32
    return %c0_i32, %c0_i32_0 : i32, i32
  }
  func.func @transform_5(%arg0: i32) -> (i32, i32) {
    %c0_i32 = arith.constant 0 : i32
    %c0_i32_0 = arith.constant 0 : i32
    %c0_i32_1 = arith.constant 0 : i32
    return %c0_i32, %c0_i32_0 : i32, i32
  }
  func.func @transform_6(%arg0: i32) -> (i32, i32, i32) {
    %c0_i32 = arith.constant 0 : i32
    %c0_i32_0 = arith.constant 0 : i32
    %c0_i32_1 = arith.constant 0 : i32
    return %arg0, %c0_i32, %c0_i32_0 : i32, i32, i32
  }
}

</mosaic_0001>

<llo_original>
// kernel: tile.18
$region0: #{tile.18}
  #allocation0 [shape = 's32[1]{0}', space=sflag, size = 0x4, scoped, tag = 'scoped memory for tile.18']
  %s0 = inlined_call_operand.vmem [shape: f32[8], index: 0, kind: input, shape index: {}]
  %s1 = inlined_call_operand.vmem [shape: f32[16,8], index: 1, kind: output, shape index: {}]
  // Predicated region
  $region2: #{tile.18} parent=0 // pred_check
    _
  $region3: #{tile.18} parent=0 // pred_check_branch
    %3 = sbr.rel (0) target = $region5
  $region4: #{tile.18} parent=0 // pred_region
    _
  $region5: #{tile.18} parent=0 // pred_fallthru
    _
  %v4 = vld [vmem:[%s0] ss:$0 sm:$0xff]
  %5 = vst [vmem:[%s1] sm:$0xff] %v4
  %s6 = scalar_lea.vmem %s1, 8
  %7 = vst [vmem:[%s6] sm:$0xff] %v4

// kernel: tile.19
$region0: #{tile.19}
  %s0 = inlined_call_operand.vmem [shape: f32[16,8], index: 0, kind: input, shape index: {}]
  %s1 = inlined_call_operand.vmem [shape: f32[1,128], index: 1, kind: output, shape index: {}]
  $region1: #{tile.19} parent=0
    #allocation0 [shape = 'u8[4096]{0}', space=vmem, size = 0x1000, scoped, tag = 'scoped mem for output reshape']
    %v2 = vld [vmem:[%s0] sm:$0x1]
    %vm3 = vcmask 64512
    %4 = vst.msk [vmem:[#allocation0] sm:$0x1] %vm3, %v2
    %s5 = scalar_lea.vmem %s0, 15
    %v6 = vld [vmem:[%s5] sm:$0x1]
    %7 = vrot.lane.b32.xlu0 %v6, 120
    %v8 = vpop.permute.xlu0 %7
    %vm9 = vcmask 1048512
    %10 = vst.msk [vmem:[#allocation0] sm:$0x1] %vm9, %v8
    %s11 = scalar_lea.vmem %s0, 14
    %v12 = vld [vmem:[%s11] sm:$0x1]
    %13 = vrot.lane.b32.xlu0 %v12, 112
    %v14 = vpop.permute.xlu0 %13
    %vm15 = vcmask 982912
    %16 = vst.msk [vmem:[#allocation0] sm:$0x1] %vm15, %v14
    %s17 = scalar_lea.vmem %s0, 13
    %v18 = vld [vmem:[%s17] sm:$0x1]
    %19 = vrot.lane.b32.xlu0 %v18, 104
    %v20 = vpop.permute.xlu0 %19
    %vm21 = vcmask 917312
    %22 = vst.msk [vmem:[#allocation0] sm:$0x1] %vm21, %v20
    %s23 = scalar_lea.vmem %s0, 12
    %v24 = vld [vmem:[%s23] sm:$0x1]
    %25 = vrot.lane.b32.xlu0 %v24, 96
    %v26 = vpop.permute.xlu0 %25
    %vm27 = vcmask 851712
    %28 = vst.msk [vmem:[#allocation0] sm:$0x1] %vm27, %v26
    %s29 = scalar_lea.vmem %s0, 11
    %v30 = vld [vmem:[%s29] sm:$0x1]
    %31 = vrot.lane.b32.xlu0 %v30, 88
    %v32 = vpop.permute.xlu0 %31
    %vm33 = vcmask 786112
    %34 = vst.msk [vmem:[#allocation0] sm:$0x1] %vm33, %v32
    %s35 = scalar_lea.vmem %s0, 10
    %v36 = vld [vmem:[%s35] sm:$0x1]
    %37 = vrot.lane.b32.xlu0 %v36, 80
    %v38 = vpop.permute.xlu0 %37
    %vm39 = vcmask 720512
    %40 = vst.msk [vmem:[#allocation0] sm:$0x1] %vm39, %v38
    %s41 = scalar_lea.vmem %s0, 9
    %v42 = vld [vmem:[%s41] sm:$0x1]
    %43 = vrot.lane.b32.xlu0 %v42, 72
    %v44 = vpop.permute.xlu0 %43
    %vm45 = vcmask 654912
    %46 = vst.msk [vmem:[#allocation0] sm:$0x1] %vm45, %v44
    %s47 = scalar_lea.vmem %s0, 8
    %v48 = vld [vmem:[%s47] sm:$0x1]
    %49 = vrot.lane.b32.xlu0 %v48, 64
    %v50 = vpop.permute.xlu0 %49
    %vm51 = vcmask 589312
    %52 = vst.msk [vmem:[#allocation0] sm:$0x1] %vm51, %v50
    %s53 = scalar_lea.vmem %s0, 7
    %v54 = vld [vmem:[%s53] sm:$0x1]
    %55 = vrot.lane.b32.xlu0 %v54, 56
    %v56 = vpop.permute.xlu0 %55
    %vm57 = vcmask 523712
    %58 = vst.msk [vmem:[#allocation0] sm:$0x1] %vm57, %v56
    %s59 = scalar_lea.vmem %s0, 6
    %v60 = vld [vmem:[%s59] sm:$0x1]
    %61 = vrot.lane.b32.xlu0 %v60, 48
    %v62 = vpop.permute.xlu0 %61
    %vm63 = vcmask 458112
    %64 = vst.msk [vmem:[#allocation0] sm:$0x1] %vm63, %v62
    %s65 = scalar_lea.vmem %s0, 5
    %v66 = vld [vmem:[%s65] sm:$0x1]
    %67 = vrot.lane.b32.xlu0 %v66, 40
    %v68 = vpop.permute.xlu0 %67
    %vm69 = vcmask 392512
    %70 = vst.msk [vmem:[#allocation0] sm:$0x1] %vm69, %v68
    %s71 = scalar_lea.vmem %s0, 4
    %v72 = vld [vmem:[%s71] sm:$0x1]
    %73 = vrot.lane.b32.xlu0 %v72, 32
    %v74 = vpop.permute.xlu0 %73
    %vm75 = vcmask 326912
    %76 = vst.msk [vmem:[#allocation0] sm:$0x1] %vm75, %v74
    %s77 = scalar_lea.vmem %s0, 3
    %v78 = vld [vmem:[%s77] sm:$0x1]
    %79 = vrot.lane.b32.xlu0 %v78, 24
    %v80 = vpop.permute.xlu0 %79
    %vm81 = vcmask 261312
    %82 = vst.msk [vmem:[#allocation0] sm:$0x1] %vm81, %v80
    %s83 = scalar_lea.vmem %s0, 2
    %v84 = vld [vmem:[%s83] sm:$0x1]
    %85 = vrot.lane.b32.xlu0 %v84, 16
    %v86 = vpop.permute.xlu0 %85
    %vm87 = vcmask 195712
    %88 = vst.msk [vmem:[#allocation0] sm:$0x1] %vm87, %v86
    %s89 = scalar_lea.vmem %s0, 1
    %v90 = vld [vmem:[%s89] sm:$0x1]
    %91 = vrot.lane.b32.xlu0 %v90, 8
    %v92 = vpop.permute.xlu0 %91
    %vm93 = vcmask 130112
    %94 = vst.msk [vmem:[#allocation0] sm:$0x1] %vm93, %v92
    %s96 = sshllo.u32 0, 1
    %v98 = vld [vmem:[#allocation0] sm:%s96]
    %s99 = sshllo.u32 0, 1
    %100 = vst [vmem:[%s1] sm:%s99] %v98

// kernel: dblock_forward.1
$region0: #{dblock_forward.1}
  #allocation0 [shape = 'u32[]', space=smem, size = 0x4, offset = 0x4, fixed_abs, tag = 'smem constant byte address 0x4 - core index']
  #allocation1 [shape = 'u32[144,128]{1,0:T(1,128)}', space=vmem, size = 0x12000, scoped, tag = 'internal scratch']
  %s0 = inlined_call_operand.vmem [shape: f32[2,16,64], index: 0, kind: input, shape index: {}]
  %s1 = inlined_call_operand.vmem [shape: f32[3,64,128], index: 1, kind: input, shape index: {}]
  %s2 = inlined_call_operand.vmem [shape: f32[1,128], index: 2, kind: input, shape index: {}]
  %s3 = inlined_call_operand.vmem [shape: f32[3,128,128], index: 3, kind: input, shape index: {}]
  %s4 = inlined_call_operand.vmem [shape: f32[64,128], index: 4, kind: input, shape index: {}]
  %s5 = inlined_call_operand.vmem [shape: f32[1,128], index: 5, kind: input, shape index: {}]
  %s6 = inlined_call_operand.vmem [shape: f32[2,16,128], index: 6, kind: output, shape index: {}]
  %s7 = sld [smem:[#allocation0]]
  $region57: #{dblock_forward.1} parent=0
    _
  %s9 = ssub.s32 1, %s7
  %s10 = scalar_select 0, %s9, %s7
  loop: start=0, step=1, limit=4
  $region2: #{dblock_forward.1} parent=0 // loop_pre_header
    _
  $region3: #{dblock_forward.1} parent=0 // loop_header
    %s12 = sphi 0, %s16
    %p13 = scmp.ge.s32.totalorder %s12, 4
    %s22 = sphi 0, %s24
    %s25 = sphi 0, %s22
    %s26 = sphi 0, %s25
    %s42 = sphi 0, %s26
    %s46 = sphi 0, %s46
    %s48 = sphi 0, %s46
    %s49 = sphi 0, %s48
    %s63 = sphi 0, %s49
    %s67 = sphi 0, %s67
    %s69 = sphi 0, %s67
    %s70 = sphi 0, %s69
    %s84 = sphi 0, %s70
    %s88 = sphi 0, %s88
    %s90 = sphi 0, %s88
    %s91 = sphi 0, %s90
    %s105 = sphi 0, %s91
    %s109 = sphi 0, %s109
    %s111 = sphi 0, %s109
    %s112 = sphi 0, %s111
    %s126 = sphi 0, %s112
    %s130 = sphi 0, %s130
    %s132 = sphi 0, %s130
    %s133 = sphi 0, %s132
    %s147 = sphi 0, %s133
    %s153 = sphi 0, %s155
    %s156 = sphi 0, %s153
    %s157 = sphi 0, %s156
    %s173 = sphi 0, %s157
  $region4: #{dblock_forward.1} parent=0 // loop_header_branch
    %15 = sbr.rel (%p13) target = $region8
  $region5: #{dblock_forward.1} parent=0 // loop_body
    %s17 = ssub.s32 %s12, 1
    %s18 = ssub.s32 %s12, 2
    %s19 = sadd.s32 %s12, 1
    %s20 = ssub.s32 %s12, %s19
    %p21 = scmp.eq.s32.totalorder %s20, 0
    %s23 = sadd.s32 %s22, 1
    %s24 = scalar_select %p21, %s22, %s23
    %p27 = pneg %p21
    %p28 = scmp.eq.s32.totalorder %s12, 1
    %p29 = por %p27, %p28
    %p30 = scmp.ne.s32.totalorder %s22, %s25
    %p31 = scmp.eq.s32.totalorder %s12, 0
    %p32 = por %p30, %p31
    %p33 = scmp.ne.s32.totalorder %s22, %s25
    %p34 = scmp.eq.s32.totalorder %s17, 1
    %p35 = por %p33, %p34
    %p36 = scmp.ne.s32.totalorder %s25, %s26
    %p37 = scmp.eq.s32.totalorder %s17, 0
    %p38 = por %p36, %p37
    %p39 = scmp.ne.s32.totalorder %s25, %s26
    %p40 = scmp.eq.s32.totalorder %s18, 1
    %p41 = por %p39, %p40
    %p43 = scmp.ne.s32.totalorder %s26, %s42
    %p44 = scmp.eq.s32.totalorder %s18, 0
    %p45 = por %p43, %p44
    %s47 = sadd.s32 %s46, 1
    %p50 = scmp.eq.s32.totalorder %s12, 1
    %p51 = scmp.ne.s32.totalorder %s46, %s48
    %p52 = scmp.eq.s32.totalorder %s12, 0
    %p53 = por %p51, %p52
    %p54 = scmp.ne.s32.totalorder %s46, %s48
    %p55 = scmp.eq.s32.totalorder %s17, 1
    %p56 = por %p54, %p55
    %p57 = scmp.ne.s32.totalorder %s48, %s49
    %p58 = scmp.eq.s32.totalorder %s17, 0
    %p59 = por %p57, %p58
    %p60 = scmp.ne.s32.totalorder %s48, %s49
    %p61 = scmp.eq.s32.totalorder %s18, 1
    %p62 = por %p60, %p61
    %p64 = scmp.ne.s32.totalorder %s49, %s63
    %p65 = scmp.eq.s32.totalorder %s18, 0
    %p66 = por %p64, %p65
    %s68 = sadd.s32 %s67, 1
    %p71 = scmp.eq.s32.totalorder %s12, 1
    %p72 = scmp.ne.s32.totalorder %s67, %s69
    %p73 = scmp.eq.s32.totalorder %s12, 0
    %p74 = por %p72, %p73
    %p75 = scmp.ne.s32.totalorder %s67, %s69
    %p76 = scmp.eq.s32.totalorder %s17, 1
    %p77 = por %p75, %p76
    %p78 = scmp.ne.s32.totalorder %s69, %s70
    %p79 = scmp.eq.s32.totalorder %s17, 0
    %p80 = por %p78, %p79
    %p81 = scmp.ne.s32.totalorder %s69, %s70
    %p82 = scmp.eq.s32.totalorder %s18, 1
    %p83 = por %p81, %p82
    %p85 = scmp.ne.s32.totalorder %s70, %s84
    %p86 = scmp.eq.s32.totalorder %s18, 0
    %p87 = por %p85, %p86
    %s89 = sadd.s32 %s88, 1
    %p92 = scmp.eq.s32.totalorder %s12, 1
    %p93 = scmp.ne.s32.totalorder %s88, %s90
    %p94 = scmp.eq.s32.totalorder %s12, 0
    %p95 = por %p93, %p94
    %p96 = scmp.ne.s32.totalorder %s88, %s90
    %p97 = scmp.eq.s32.totalorder %s17, 1
    %p98 = por %p96, %p97
    %p99 = scmp.ne.s32.totalorder %s90, %s91
    %p100 = scmp.eq.s32.totalorder %s17, 0
    %p101 = por %p99, %p100
    %p102 = scmp.ne.s32.totalorder %s90, %s91
    %p103 = scmp.eq.s32.totalorder %s18, 1
    %p104 = por %p102, %p103
    %p106 = scmp.ne.s32.totalorder %s91, %s105
    %p107 = scmp.eq.s32.totalorder %s18, 0
    %p108 = por %p106, %p107
    %s110 = sadd.s32 %s109, 1
    %p113 = scmp.eq.s32.totalorder %s12, 1
    %p114 = scmp.ne.s32.totalorder %s109, %s111
    %p115 = scmp.eq.s32.totalorder %s12, 0
    %p116 = por %p114, %p115
    %p117 = scmp.ne.s32.totalorder %s109, %s111
    %p118 = scmp.eq.s32.totalorder %s17, 1
    %p119 = por %p117, %p118
    %p120 = scmp.ne.s32.totalorder %s111, %s112
    %p121 = scmp.eq.s32.totalorder %s17, 0
    %p122 = por %p120, %p121
    %p123 = scmp.ne.s32.totalorder %s111, %s112
    %p124 = scmp.eq.s32.totalorder %s18, 1
    %p125 = por %p123, %p124
    %p127 = scmp.ne.s32.totalorder %s112, %s126
    %p128 = scmp.eq.s32.totalorder %s18, 0
    %p129 = por %p127, %p128
    %s131 = sadd.s32 %s130, 1
    %p134 = scmp.eq.s32.totalorder %s12, 1
    %p135 = scmp.ne.s32.totalorder %s130, %s132
    %p136 = scmp.eq.s32.totalorder %s12, 0
    %p137 = por %p135, %p136
    %p138 = scmp.ne.s32.totalorder %s130, %s132
    %p139 = scmp.eq.s32.totalorder %s17, 1
    %p140 = por %p138, %p139
    %p141 = scmp.ne.s32.totalorder %s132, %s133
    %p142 = scmp.eq.s32.totalorder %s17, 0
    %p143 = por %p141, %p142
    %p144 = scmp.ne.s32.totalorder %s132, %s133
    %p145 = scmp.eq.s32.totalorder %s18, 1
    %p146 = por %p144, %p145
    %p148 = scmp.ne.s32.totalorder %s133, %s147
    %p149 = scmp.eq.s32.totalorder %s18, 0
    %p150 = por %p148, %p149
    %s151 = ssub.s32 %s12, %s19
    %p152 = scmp.eq.s32.totalorder %s151, 0
    %s154 = sadd.s32 %s153, 1
    %s155 = scalar_select %p152, %s153, %s154
    %p158 = pneg %p152
    %p159 = scmp.eq.s32.totalorder %s12, 1
    %p160 = por %p158, %p159
    %p161 = scmp.ne.s32.totalorder %s153, %s156
    %p162 = scmp.eq.s32.totalorder %s12, 0
    %p163 = por %p161, %p162
    %p164 = scmp.ne.s32.totalorder %s153, %s156
    %p165 = scmp.eq.s32.totalorder %s17, 1
    %p166 = por %p164, %p165
    %p167 = scmp.ne.s32.totalorder %s156, %s157
    %p168 = scmp.eq.s32.totalorder %s17, 0
    %p169 = por %p167, %p168
    %p170 = scmp.ne.s32.totalorder %s156, %s157
    %p171 = scmp.eq.s32.totalorder %s18, 1
    %p172 = por %p170, %p171
    %p174 = scmp.ne.s32.totalorder %s157, %s173
    %p175 = scmp.eq.s32.totalorder %s18, 0
    %p176 = por %p174, %p175
    %p177 = scmp.le.s32.totalorder 1, %s12
    %p178 = scmp.lt.s32.totalorder %s12, 3
    %p179 = pnand %p177, %p178
    %p180 = pneg %p179
    // Predicated region
    $region9: #{dblock_forward.1} parent=5 // pred_check
      _
    $region10: #{dblock_forward.1} parent=5 // pred_check_branch
      %182 = sbr.rel (%p179) target = $region12
    $region11: #{dblock_forward.1} parent=5 // pred_region
      %s183 = ssub.s32 %s12, 1
      // Predicated region
      $region13: #{dblock_forward.1} parent=11 // pred_check
        %p184 = pneg %p59
      $region14: #{dblock_forward.1} parent=11 // pred_check_branch
        %186 = sbr.rel (%p184) target = $region16
      $region15: #{dblock_forward.1} parent=11 // pred_region
        _
      $region16: #{dblock_forward.1} parent=11 // pred_fallthru
        _
      // Predicated region
      $region17: #{dblock_forward.1} parent=11 // pred_check
        %p187 = pneg %p80
      $region18: #{dblock_forward.1} parent=11 // pred_check_branch
        %189 = sbr.rel (%p187) target = $region20
      $region19: #{dblock_forward.1} parent=11 // pred_region
        _
      $region20: #{dblock_forward.1} parent=11 // pred_fallthru
        _
      // Predicated region
      $region21: #{dblock_forward.1} parent=11 // pred_check
        %p190 = pneg %p101
      $region22: #{dblock_forward.1} parent=11 // pred_check_branch
        %192 = sbr.rel (%p190) target = $region24
      $region23: #{dblock_forward.1} parent=11 // pred_region
        _
      $region24: #{dblock_forward.1} parent=11 // pred_fallthru
        _
      // Predicated region
      $region25: #{dblock_forward.1} parent=11 // pred_check
        %p193 = pneg %p122
      $region26: #{dblock_forward.1} parent=11 // pred_check_branch
        %195 = sbr.rel (%p193) target = $region28
      $region27: #{dblock_forward.1} parent=11 // pred_region
        _
      $region28: #{dblock_forward.1} parent=11 // pred_fallthru
        _
      // Predicated region
      $region29: #{dblock_forward.1} parent=11 // pred_check
        %p196 = pneg %p143
      $region30: #{dblock_forward.1} parent=11 // pred_check_branch
        %198 = sbr.rel (%p196) target = $region32
      $region31: #{dblock_forward.1} parent=11 // pred_region
        _
      $region32: #{dblock_forward.1} parent=11 // pred_fallthru
        _
    $region12: #{dblock_forward.1} parent=5 // pred_fallthru
      _
    %p199 = scmp.lt.s32.totalorder %s12, 2
    // Predicated region
    $region33: #{dblock_forward.1} parent=5 // pred_check
      %p200 = pneg %p199
    $region34: #{dblock_forward.1} parent=5 // pred_check_branch
      %202 = sbr.rel (%p200) target = $region36
    $region35: #{dblock_forward.1} parent=5 // pred_region
      // Predicated region
      $region37: #{dblock_forward.1} parent=35 // pred_check
        %p203 = pneg %p32
      $region38: #{dblock_forward.1} parent=35 // pred_check_branch
        %205 = sbr.rel (%p203) target = $region40
      $region39: #{dblock_forward.1} parent=35 // pred_region
        %p206 = scmp.lt.s32.totalorder %s12, 1
        %s207 = scalar_select %p206, %s12, 1
        %s208 = smul.addr %s207, 2
        %s209 = smul.addr %s208, 8
        %s210 = scalar_lea.vmem %s0, %s209
      $region40: #{dblock_forward.1} parent=35 // pred_fallthru
        _
    $region36: #{dblock_forward.1} parent=5 // pred_fallthru
      _
    %p211 = scmp.le.s32.totalorder 1, %s12
    %p212 = scmp.lt.s32.totalorder %s12, 3
    %p213 = pnand %p211, %p212
    %p214 = pneg %p213
    // Predicated region
    $region41: #{dblock_forward.1} parent=5 // pred_check
      _
    $region42: #{dblock_forward.1} parent=5 // pred_check_branch
      %216 = sbr.rel (%p213) target = $region44
    $region43: #{dblock_forward.1} parent=5 // pred_region
      %s217 = ssub.s32 %s12, 1
      %p218 = scmp.lt.s32.totalorder %s17, 1
      %s219 = scalar_select %p218, %s17, 1
      %s220 = smul.addr %s219, 2
      %s221 = smul.addr %s220, 8
      %s222 = scalar_lea.vmem %s0, %s221
      %p223 = pneg %p38
      %p224 = pneg %p35
      %p225 = pneg %p59
      %p226 = pneg %p56
      %p227 = pneg %p80
      %p228 = pneg %p77
      %p229 = pneg %p101
      %p230 = pneg %p98
      %p231 = pneg %p122
      %p232 = pneg %p119
      %p233 = pneg %p143
      %p234 = pneg %p140
      %p235 = pneg %p169
      %p236 = pneg %p166
      %p237 = scmp.lt.s32.totalorder %s17, 1
      %s238 = scalar_select %p237, %s17, 1
      %s239 = smul.addr %s238, 2
      %s240 = smul.addr %s239, 8
      %s241 = scalar_lea.vmem %s6, %s240
      %p242 = scmp.lt.s32.totalorder %s17, 1
      %s243 = scalar_select %p242, %s17, 1
      %s244 = smul.addr %s243, 2
      %s245 = smul.addr %s244, 8
      %s246 = scalar_lea.vmem %s0, %s245
      %p247 = scmp.lt.s32.totalorder %s17, 1
      %s248 = scalar_select %p247, %s17, 1
      %s249 = smul.addr %s248, 2
      %s250 = smul.addr %s249, 8
      %s251 = scalar_lea.vmem %s6, %s250
      %v252 = vld [vmem:[%s246] sm:$0xff]
      %v253 = vld [vmem:[%s246 + $0x8] sm:$0xff]
      %v254 = vlaneseq
      %v255 = vshrl.u32 %v254, 7
      %v256 = vadd.s32 %v255, 8
      %v257 = vlaneseq
      %v258 = vand.u32 %v257, 127
      %v259 = vsub.s32 %v255, 1
      %v260 = vsub.s32 %v256, 1
      %vm261 = vcmp.eq.s32.totalorder %v258, %v259
      %vm262 = vcmp.eq.s32.totalorder %v258, %v260
      %v263 = vsel %vm261, 1, 0
      %v264 = vsel %vm262, 1, 0
      %v265 = vcvt.s32.f32 %v263
      %v266 = vcvt.s32.f32 %v264
      %v267 = vadd.s32 %v255, 1
      %v268 = vadd.s32 %v256, 1
      %vm269 = vcmp.eq.s32.totalorder %v258, %v267
      %vm270 = vcmp.eq.s32.totalorder %v258, %v268
      %v271 = vsel %vm269, 1, 0
      %v272 = vsel %vm270, 1, 0
      %v273 = vcvt.s32.f32 %v271
      %v274 = vcvt.s32.f32 %v272
      %s275 = scalar_lea.vmem %s1, 64
      %v276 = vld [vmem:[%s275] sm:$0xff]
      %v277 = vld [vmem:[%s275 + $0x8] sm:$0xff]
      %v278 = vld [vmem:[%s275 + $0x10] sm:$0xff]
      %v279 = vld [vmem:[%s275 + $0x18] sm:$0xff]
      %v280 = vld [vmem:[%s275 + $0x20] sm:$0xff]
      %v281 = vld [vmem:[%s275 + $0x28] sm:$0xff]
      %v282 = vld [vmem:[%s275 + $0x30] sm:$0xff]
      %v283 = vld [vmem:[%s275 + $0x38] sm:$0xff]
      %vm284 = vcmask 130048
      %v286 = vsel %vm284, %v265, 0
      %v289 = vsel %vm284, %v266, 0
      %291 = vmatprep.subr.mxu0 0.0
      %292 = vmatpush1.msra.mxu0 %v252
      %293 = vmatprep.subr.mxu0 0.0
      %294 = vmatpush1.msra.mxu0 %v253
      %295 = vmatprep.subr.mxu0 0.0
      %296 = vmatpush1.msra.mxu0 0.0
      %297 = vmatprep.subr.mxu0 0.0
      %298 = vmatpush1.msra.mxu0 0.0
      %299 = vmatprep.subr.mxu0 0.0
      %300 = vmatpush1.msra.mxu0 0.0
      %301 = vmatprep.subr.mxu0 0.0
      %302 = vmatpush1.msra.mxu0 0.0
      %303 = vmatprep.subr.mxu0 0.0
      %304 = vmatpush1.msra.mxu0 0.0
      %305 = vmatprep.subr.mxu0 0.0
      %306 = vmatpush1.msra.mxu0 0.0
      %307 = vmatprep.subr.mxu0 0.0
      %308 = vmatpush1.msra.mxu0 0.0
      %309 = vmatprep.subr.mxu0 0.0
      %310 = vmatpush1.msra.mxu0 0.0
      %311 = vmatprep.subr.mxu0 0.0
      %312 = vmatpush1.msra.mxu0 0.0
      %313 = vmatprep.subr.mxu0 0.0
      %314 = vmatpush1.msra.mxu0 0.0
      %315 = vmatprep.subr.mxu0 0.0
      %316 = vmatpush1.msra.mxu0 0.0
      %317 = vmatprep.subr.mxu0 0.0
      %318 = vmatpush1.msra.mxu0 0.0
      %319 = vmatprep.subr.mxu0 0.0
      %320 = vmatpush1.msra.mxu0 0.0
      %321 = vmatprep.subr.mxu0 0.0
      %322 = vmatpush1.msra.mxu0 0.0
      %323 = vmatprep.subr.mxu0 0.0
      %324 = vmatpush1.msra.mxu0 0.0
      %325 = vmatprep.subr.mxu0 0.0
      %326 = vmatpush1.msra.mxu0 0.0
      %327 = vmatprep.subr.mxu0 0.0
      %328 = vmatpush1.msra.mxu0 0.0
      %329 = vmatprep.subr.mxu0 0.0
      %330 = vmatpush1.msra.mxu0 0.0
      %331 = vmatprep.subr.mxu0 0.0
      %332 = vmatpush1.msra.mxu0 0.0
      %333 = vmatprep.subr.mxu0 0.0
      %334 = vmatpush1.msra.mxu0 0.0
      %335 = vmatprep.subr.mxu0 0.0
      %336 = vmatpush1.msra.mxu0 0.0
      %337 = vmatprep.subr.mxu0 0.0
      %338 = vmatpush1.msra.mxu0 0.0
      %339 = vmatprep.subr.mxu0 0.0
      %340 = vmatpush1.msra.mxu0 0.0
      %341 = vmatprep.subr.mxu0 0.0
      %342 = vmatpush1.msra.mxu0 0.0
      %343 = vmatprep.subr.mxu0 0.0
      %344 = vmatpush1.msra.mxu0 0.0
      %345 = vmatprep.subr.mxu0 0.0
      %346 = vmatpush1.msra.mxu0 0.0
      %347 = vmatprep.subr.mxu0 0.0
      %348 = vmatpush1.msra.mxu0 0.0
      %349 = vmatprep.subr.mxu0 0.0
      %350 = vmatpush1.msra.mxu0 0.0
      %351 = vmatprep.subr.mxu0 0.0
      %352 = vmatpush1.msra.mxu0 0.0
      %353 = vmatprep.subr.mxu0 0.0
      %354 = vmatpush1.msra.mxu0 0.0
      %355 = vmatprep.mubr.f32.mxu0 0.0
      %356 = vmatmul.mubr.f32.gmra.mrb[0].mxu0 %v286
      %v357 = vpop.f32.mrb[0].mxu0
      %v358 = vadd.f32 0.0, %v357
      %v359 = vpop.f32.mrb[0].mxu0
      %360 = vmatprep.mubr.f32.mxu0 0.0
      %361 = vmatmul.mubr.f32.gmra.mrb[0].mxu0 %v289
      %v362 = vpop.f32.mrb[0].mxu0
      %v363 = vadd.f32 0.0, %v362
      %v364 = vpop.f32.mrb[0].mxu0
      %365 = vdwg.mxu0
      %v366 = vld [vmem:[%s1] sm:$0xff]
      %v367 = vld [vmem:[%s1 + $0x8] sm:$0xff]
      %v368 = vld [vmem:[%s1 + $0x10] sm:$0xff]
      %v369 = vld [vmem:[%s1 + $0x18] sm:$0xff]
      %v370 = vld [vmem:[%s1 + $0x20] sm:$0xff]
      %v371 = vld [vmem:[%s1 + $0x28] sm:$0xff]
      %v372 = vld [vmem:[%s1 + $0x30] sm:$0xff]
      %v373 = vld [vmem:[%s1 + $0x38] sm:$0xff]
      %vm374 = vcmask 523264
      %v376 = vsel %vm374, %v358, 0
      %v379 = vsel %vm374, %v363, 0
      %381 = vmatprep.subr.mxu0 0.0
      %382 = vmatpush1.msra.mxu0 %v366
      %383 = vmatprep.subr.mxu0 0.0
      %384 = vmatpush1.msra.mxu0 %v367
      %385 = vmatprep.subr.mxu0 0.0
      %386 = vmatpush1.msra.mxu0 %v368
      %387 = vmatprep.subr.mxu0 0.0
      %388 = vmatpush1.msra.mxu0 %v369
      %389 = vmatprep.subr.mxu0 0.0
      %390 = vmatpush1.msra.mxu0 %v370
      %391 = vmatprep.subr.mxu0 0.0
      %392 = vmatpush1.msra.mxu0 %v371
      %393 = vmatprep.subr.mxu0 0.0
      %394 = vmatpush1.msra.mxu0 %v372
      %395 = vmatprep.subr.mxu0 0.0
      %396 = vmatpush1.msra.mxu0 %v373
      %397 = vmatprep.subr.mxu0 0.0
      %398 = vmatpush1.msra.mxu0 0.0
      %399 = vmatprep.subr.mxu0 0.0
      %400 = vmatpush1.msra.mxu0 0.0
      %401 = vmatprep.subr.mxu0 0.0
      %402 = vmatpush1.msra.mxu0 0.0
      %403 = vmatprep.subr.mxu0 0.0
      %404 = vmatpush1.msra.mxu0 0.0
      %405 = vmatprep.subr.mxu0 0.0
      %406 = vmatpush1.msra.mxu0 0.0
      %407 = vmatprep.subr.mxu0 0.0
      %408 = vmatpush1.msra.mxu0 0.0
      %409 = vmatprep.subr.mxu0 0.0
      %410 = vmatpush1.msra.mxu0 0.0
      %411 = vmatprep.subr.mxu0 0.0
      %412 = vmatpush1.msra.mxu0 0.0
      %413 = vmatprep.subr.mxu0 0.0
      %414 = vmatpush1.msra.mxu0 0.0
      %415 = vmatprep.subr.mxu0 0.0
      %416 = vmatpush1.msra.mxu0 0.0
      %417 = vmatprep.subr.mxu0 0.0
      %418 = vmatpush1.msra.mxu0 0.0
      %419 = vmatprep.subr.mxu0 0.0
      %420 = vmatpush1.msra.mxu0 0.0
      %421 = vmatprep.subr.mxu0 0.0
      %422 = vmatpush1.msra.mxu0 0.0
      %423 = vmatprep.subr.mxu0 0.0
      %424 = vmatpush1.msra.mxu0 0.0
      %425 = vmatprep.subr.mxu0 0.0
      %426 = vmatpush1.msra.mxu0 0.0
      %427 = vmatprep.subr.mxu0 0.0
      %428 = vmatpush1.msra.mxu0 0.0
      %429 = vmatprep.subr.mxu0 0.0
      %430 = vmatpush1.msra.mxu0 0.0
      %431 = vmatprep.subr.mxu0 0.0
      %432 = vmatpush1.msra.mxu0 0.0
      %433 = vmatprep.subr.mxu0 0.0
      %434 = vmatpush1.msra.mxu0 0.0
      %435 = vmatprep.subr.mxu0 0.0
      %436 = vmatpush1.msra.mxu0 0.0
      %437 = vmatprep.subr.mxu0 0.0
      %438 = vmatpush1.msra.mxu0 0.0
      %439 = vmatprep.subr.mxu0 0.0
      %440 = vmatpush1.msra.mxu0 0.0
      %441 = vmatprep.subr.mxu0 0.0
      %442 = vmatpush1.msra.mxu0 0.0
      %443 = vmatprep.subr.mxu0 0.0
      %444 = vmatpush1.msra.mxu0 0.0
      %445 = vmatprep.mubr.f32.mxu0 0.0
      %446 = vmatmul.mubr.f32.gmra.mrb[0].mxu0 %v376
      %v447 = vpop.f32.mrb[0].mxu0
      %v448 = vadd.f32 0.0, %v447
      %v449 = vpop.f32.mrb[0].mxu0
      %450 = vmatprep.mubr.f32.mxu0 0.0
      %451 = vmatmul.mubr.f32.gmra.mrb[0].mxu0 %v379
      %v452 = vpop.f32.mrb[0].mxu0
      %v453 = vadd.f32 0.0, %v452
      %v454 = vpop.f32.mrb[0].mxu0
      %455 = vdwg.mxu0
      %v457 = vsel %vm374, %v252, 0
      %v460 = vsel %vm374, %v253, 0
      %462 = vmatprep.subr.mxu0 0.0
      %463 = vmatpush1.msra.mxu0 %v276
      %464 = vmatprep.subr.mxu0 0.0
      %465 = vmatpush1.msra.mxu0 %v277
      %466 = vmatprep.subr.mxu0 0.0
      %467 = vmatpush1.msra.mxu0 %v278
      %468 = vmatprep.subr.mxu0 0.0
      %469 = vmatpush1.msra.mxu0 %v279
      %470 = vmatprep.subr.mxu0 0.0
      %471 = vmatpush1.msra.mxu0 %v280
      %472 = vmatprep.subr.mxu0 0.0
      %473 = vmatpush1.msra.mxu0 %v281
      %474 = vmatprep.subr.mxu0 0.0
      %475 = vmatpush1.msra.mxu0 %v282
      %476 = vmatprep.subr.mxu0 0.0
      %477 = vmatpush1.msra.mxu0 %v283
      %478 = vmatprep.subr.mxu0 0.0
      %479 = vmatpush1.msra.mxu0 0.0
      %480 = vmatprep.subr.mxu0 0.0
      %481 = vmatpush1.msra.mxu0 0.0
      %482 = vmatprep.subr.mxu0 0.0
      %483 = vmatpush1.msra.mxu0 0.0
      %484 = vmatprep.subr.mxu0 0.0
      %485 = vmatpush1.msra.mxu0 0.0
      %486 = vmatprep.subr.mxu0 0.0
      %487 = vmatpush1.msra.mxu0 0.0
      %488 = vmatprep.subr.mxu0 0.0
      %489 = vmatpush1.msra.mxu0 0.0
      %490 = vmatprep.subr.mxu0 0.0
      %491 = vmatpush1.msra.mxu0 0.0
      %492 = vmatprep.subr.mxu0 0.0
      %493 = vmatpush1.msra.mxu0 0.0
      %494 = vmatprep.subr.mxu0 0.0
      %495 = vmatpush1.msra.mxu0 0.0
      %496 = vmatprep.subr.mxu0 0.0
      %497 = vmatpush1.msra.mxu0 0.0
      %498 = vmatprep.subr.mxu0 0.0
      %499 = vmatpush1.msra.mxu0 0.0
      %500 = vmatprep.subr.mxu0 0.0
      %501 = vmatpush1.msra.mxu0 0.0
      %502 = vmatprep.subr.mxu0 0.0
      %503 = vmatpush1.msra.mxu0 0.0
      %504 = vmatprep.subr.mxu0 0.0
      %505 = vmatpush1.msra.mxu0 0.0
      %506 = vmatprep.subr.mxu0 0.0
      %507 = vmatpush1.msra.mxu0 0.0
      %508 = vmatprep.subr.mxu0 0.0
      %509 = vmatpush1.msra.mxu0 0.0
      %510 = vmatprep.subr.mxu0 0.0
      %511 = vmatpush1.msra.mxu0 0.0
      %512 = vmatprep.subr.mxu0 0.0
      %513 = vmatpush1.msra.mxu0 0.0
      %514 = vmatprep.subr.mxu0 0.0
      %515 = vmatpush1.msra.mxu0 0.0
      %516 = vmatprep.subr.mxu0 0.0
      %517 = vmatpush1.msra.mxu0 0.0
      %518 = vmatprep.subr.mxu0 0.0
      %519 = vmatpush1.msra.mxu0 0.0
      %520 = vmatprep.subr.mxu0 0.0
      %521 = vmatpush1.msra.mxu0 0.0
      %522 = vmatprep.subr.mxu0 0.0
      %523 = vmatpush1.msra.mxu0 0.0
      %524 = vmatprep.subr.mxu0 0.0
      %525 = vmatpush1.msra.mxu0 0.0
      %526 = vmatprep.mubr.f32.mxu0 0.0
      %527 = vmatmul.mubr.f32.gmra.mrb[0].mxu0 %v457
      %v528 = vpop.f32.mrb[0].mxu0
      %v529 = vadd.f32 %v448, %v528
      %v530 = vpop.f32.mrb[0].mxu0
      %531 = vmatprep.mubr.f32.mxu0 0.0
      %532 = vmatmul.mubr.f32.gmra.mrb[0].mxu0 %v460
      %v533 = vpop.f32.mrb[0].mxu0
      %v534 = vadd.f32 %v453, %v533
      %v535 = vpop.f32.mrb[0].mxu0
      %536 = vdwg.mxu0
      %v538 = vsel %vm284, %v273, 0
      %v541 = vsel %vm284, %v274, 0
      %543 = vmatprep.subr.mxu0 0.0
      %544 = vmatpush1.msra.mxu0 %v252
      %545 = vmatprep.subr.mxu0 0.0
      %546 = vmatpush1.msra.mxu0 %v253
      %547 = vmatprep.subr.mxu0 0.0
      %548 = vmatpush1.msra.mxu0 0.0
      %549 = vmatprep.subr.mxu0 0.0
      %550 = vmatpush1.msra.mxu0 0.0
      %551 = vmatprep.subr.mxu0 0.0
      %552 = vmatpush1.msra.mxu0 0.0
      %553 = vmatprep.subr.mxu0 0.0
      %554 = vmatpush1.msra.mxu0 0.0
      %555 = vmatprep.subr.mxu0 0.0
      %556 = vmatpush1.msra.mxu0 0.0
      %557 = vmatprep.subr.mxu0 0.0
      %558 = vmatpush1.msra.mxu0 0.0
      %559 = vmatprep.subr.mxu0 0.0
      %560 = vmatpush1.msra.mxu0 0.0
      %561 = vmatprep.subr.mxu0 0.0
      %562 = vmatpush1.msra.mxu0 0.0
      %563 = vmatprep.subr.mxu0 0.0
      %564 = vmatpush1.msra.mxu0 0.0
      %565 = vmatprep.subr.mxu0 0.0
      %566 = vmatpush1.msra.mxu0 0.0
      %567 = vmatprep.subr.mxu0 0.0
      %568 = vmatpush1.msra.mxu0 0.0
      %569 = vmatprep.subr.mxu0 0.0
      %570 = vmatpush1.msra.mxu0 0.0
      %571 = vmatprep.subr.mxu0 0.0
      %572 = vmatpush1.msra.mxu0 0.0
      %573 = vmatprep.subr.mxu0 0.0
      %574 = vmatpush1.msra.mxu0 0.0
      %575 = vmatprep.subr.mxu0 0.0
      %576 = vmatpush1.msra.mxu0 0.0
      %577 = vmatprep.subr.mxu0 0.0
      %578 = vmatpush1.msra.mxu0 0.0
      %579 = vmatprep.subr.mxu0 0.0
      %580 = vmatpush1.msra.mxu0 0.0
      %581 = vmatprep.subr.mxu0 0.0
      %582 = vmatpush1.msra.mxu0 0.0
      %583 = vmatprep.subr.mxu0 0.0
      %584 = vmatpush1.msra.mxu0 0.0
      %585 = vmatprep.subr.mxu0 0.0
      %586 = vmatpush1.msra.mxu0 0.0
      %587 = vmatprep.subr.mxu0 0.0
      %588 = vmatpush1.msra.mxu0 0.0
      %589 = vmatprep.subr.mxu0 0.0
      %590 = vmatpush1.msra.mxu0 0.0
      %591 = vmatprep.subr.mxu0 0.0
      %592 = vmatpush1.msra.mxu0 0.0
      %593 = vmatprep.subr.mxu0 0.0
      %594 = vmatpush1.msra.mxu0 0.0
      %595 = vmatprep.subr.mxu0 0.0
      %596 = vmatpush1.msra.mxu0 0.0
      %597 = vmatprep.subr.mxu0 0.0
      %598 = vmatpush1.msra.mxu0 0.0
      %599 = vmatprep.subr.mxu0 0.0
      %600 = vmatpush1.msra.mxu0 0.0
      %601 = vmatprep.subr.mxu0 0.0
      %602 = vmatpush1.msra.mxu0 0.0
      %603 = vmatprep.subr.mxu0 0.0
      %604 = vmatpush1.msra.mxu0 0.0
      %605 = vmatprep.subr.mxu0 0.0
      %606 = vmatpush1.msra.mxu0 0.0
      %607 = vmatprep.mubr.f32.mxu0 0.0
      %608 = vmatmul.mubr.f32.gmra.mrb[0].mxu0 %v538
      %v609 = vpop.f32.mrb[0].mxu0
      %v610 = vadd.f32 0.0, %v609
      %v611 = vpop.f32.mrb[0].mxu0
      %612 = vmatprep.mubr.f32.mxu0 0.0
      %613 = vmatmul.mubr.f32.gmra.mrb[0].mxu0 %v541
      %v614 = vpop.f32.mrb[0].mxu0
      %v615 = vadd.f32 0.0, %v614
      %v616 = vpop.f32.mrb[0].mxu0
      %617 = vdwg.mxu0
      %s618 = scalar_lea.vmem %s1, 128
      %v619 = vld [vmem:[%s618] sm:$0xff]
      %v620 = vld [vmem:[%s618 + $0x8] sm:$0xff]
      %v621 = vld [vmem:[%s618 + $0x10] sm:$0xff]
      %v622 = vld [vmem:[%s618 + $0x18] sm:$0xff]
      %v623 = vld [vmem:[%s618 + $0x20] sm:$0xff]
      %v624 = vld [vmem:[%s618 + $0x28] sm:$0xff]
      %v625 = vld [vmem:[%s618 + $0x30] sm:$0xff]
      %v626 = vld [vmem:[%s618 + $0x38] sm:$0xff]
      %v628 = vsel %vm374, %v610, 0
      %v631 = vsel %vm374, %v615, 0
      %633 = vmatprep.subr.mxu0 0.0
      %634 = vmatpush1.msra.mxu0 %v619
      %635 = vmatprep.subr.mxu0 0.0
      %636 = vmatpush1.msra.mxu0 %v620
      %637 = vmatprep.subr.mxu0 0.0
      %638 = vmatpush1.msra.mxu0 %v621
      %639 = vmatprep.subr.mxu0 0.0
      %640 = vmatpush1.msra.mxu0 %v622
      %641 = vmatprep.subr.mxu0 0.0
      %642 = vmatpush1.msra.mxu0 %v623
      %643 = vmatprep.subr.mxu0 0.0
      %644 = vmatpush1.msra.mxu0 %v624
      %645 = vmatprep.subr.mxu0 0.0
      %646 = vmatpush1.msra.mxu0 %v625
      %647 = vmatprep.subr.mxu0 0.0
      %648 = vmatpush1.msra.mxu0 %v626
      %649 = vmatprep.subr.mxu0 0.0
      %650 = vmatpush1.msra.mxu0 0.0
      %651 = vmatprep.subr.mxu0 0.0
      %652 = vmatpush1.msra.mxu0 0.0
      %653 = vmatprep.subr.mxu0 0.0
      %654 = vmatpush1.msra.mxu0 0.0
      %655 = vmatprep.subr.mxu0 0.0
      %656 = vmatpush1.msra.mxu0 0.0
      %657 = vmatprep.subr.mxu0 0.0
      %658 = vmatpush1.msra.mxu0 0.0
      %659 = vmatprep.subr.mxu0 0.0
      %660 = vmatpush1.msra.mxu0 0.0
      %661 = vmatprep.subr.mxu0 0.0
      %662 = vmatpush1.msra.mxu0 0.0
      %663 = vmatprep.subr.mxu0 0.0
      %664 = vmatpush1.msra.mxu0 0.0
      %665 = vmatprep.subr.mxu0 0.0
      %666 = vmatpush1.msra.mxu0 0.0
      %667 = vmatprep.subr.mxu0 0.0
      %668 = vmatpush1.msra.mxu0 0.0
      %669 = vmatprep.subr.mxu0 0.0
      %670 = vmatpush1.msra.mxu0 0.0
      %671 = vmatprep.subr.mxu0 0.0
      %672 = vmatpush1.msra.mxu0 0.0
      %673 = vmatprep.subr.mxu0 0.0
      %674 = vmatpush1.msra.mxu0 0.0
      %675 = vmatprep.subr.mxu0 0.0
      %676 = vmatpush1.msra.mxu0 0.0
      %677 = vmatprep.subr.mxu0 0.0
      %678 = vmatpush1.msra.mxu0 0.0
      %679 = vmatprep.subr.mxu0 0.0
      %680 = vmatpush1.msra.mxu0 0.0
      %681 = vmatprep.subr.mxu0 0.0
      %682 = vmatpush1.msra.mxu0 0.0
      %683 = vmatprep.subr.mxu0 0.0
      %684 = vmatpush1.msra.mxu0 0.0
      %685 = vmatprep.subr.mxu0 0.0
      %686 = vmatpush1.msra.mxu0 0.0
      %687 = vmatprep.subr.mxu0 0.0
      %688 = vmatpush1.msra.mxu0 0.0
      %689 = vmatprep.subr.mxu0 0.0
      %690 = vmatpush1.msra.mxu0 0.0
      %691 = vmatprep.subr.mxu0 0.0
      %692 = vmatpush1.msra.mxu0 0.0
      %693 = vmatprep.subr.mxu0 0.0
      %694 = vmatpush1.msra.mxu0 0.0
      %695 = vmatprep.subr.mxu0 0.0
      %696 = vmatpush1.msra.mxu0 0.0
      %697 = vmatprep.mubr.f32.mxu0 0.0
      %698 = vmatmul.mubr.f32.gmra.mrb[0].mxu0 %v628
      %v699 = vpop.f32.mrb[0].mxu0
      %v700 = vadd.f32 0.0, %v699
      %v701 = vpop.f32.mrb[0].mxu0
      %702 = vmatprep.mubr.f32.mxu0 0.0
      %703 = vmatmul.mubr.f32.gmra.mrb[0].mxu0 %v631
      %v704 = vpop.f32.mrb[0].mxu0
      %v705 = vadd.f32 0.0, %v704
      %v706 = vpop.f32.mrb[0].mxu0
      %707 = vdwg.mxu0
      %v708 = vadd.f32 %v529, %v700
      %v709 = vadd.f32 %v534, %v705
      %v710 = vld [vmem:[%s2] sm:$0x1]
      %v712 = vlaneseq
      %v713 = vshrl.u32 %v712, 7
      %v714 = vsub.s32 0, %v713
      %v715 = vrot.slane %v710, %v714
      %v717 = vadd.f32 %v708, %v715
      %v718 = vadd.f32 %v709, %v715
      %v719 = vmax.f32 %v717, 0.0
      %v720 = vmax.f32 %v718, 0.0
      %v721 = vld [vmem:[%s4] sm:$0xff]
      %v722 = vld [vmem:[%s4 + $0x8] sm:$0xff]
      %v723 = vld [vmem:[%s4 + $0x10] sm:$0xff]
      %v724 = vld [vmem:[%s4 + $0x18] sm:$0xff]
      %v725 = vld [vmem:[%s4 + $0x20] sm:$0xff]
      %v726 = vld [vmem:[%s4 + $0x28] sm:$0xff]
      %v727 = vld [vmem:[%s4 + $0x30] sm:$0xff]
      %v728 = vld [vmem:[%s4 + $0x38] sm:$0xff]
      %v729 = vld [vmem:[%s5] sm:$0x1]
      %v731 = vlaneseq
      %v732 = vshrl.u32 %v731, 7
      %v733 = vsub.s32 0, %v732
      %v734 = vrot.slane %v729, %v733
      %736 = vmatprep.subr.mxu0 0.0
      %737 = vmatpush1.msra.mxu0 %v721
      %738 = vmatprep.subr.mxu0 0.0
      %739 = vmatpush1.msra.mxu0 %v722
      %740 = vmatprep.subr.mxu0 0.0
      %741 = vmatpush1.msra.mxu0 %v723
      %742 = vmatprep.subr.mxu0 0.0
      %743 = vmatpush1.msra.mxu0 %v724
      %744 = vmatprep.subr.mxu0 0.0
      %745 = vmatpush1.msra.mxu0 %v725
      %746 = vmatprep.subr.mxu0 0.0
      %747 = vmatpush1.msra.mxu0 %v726
      %748 = vmatprep.subr.mxu0 0.0
      %749 = vmatpush1.msra.mxu0 %v727
      %750 = vmatprep.subr.mxu0 0.0
      %751 = vmatpush1.msra.mxu0 %v728
      %752 = vmatprep.subr.mxu0 0.0
      %753 = vmatpush1.msra.mxu0 0.0
      %754 = vmatprep.subr.mxu0 0.0
      %755 = vmatpush1.msra.mxu0 0.0
      %756 = vmatprep.subr.mxu0 0.0
      %757 = vmatpush1.msra.mxu0 0.0
      %758 = vmatprep.subr.mxu0 0.0
      %759 = vmatpush1.msra.mxu0 0.0
      %760 = vmatprep.subr.mxu0 0.0
      %761 = vmatpush1.msra.mxu0 0.0
      %762 = vmatprep.subr.mxu0 0.0
      %763 = vmatpush1.msra.mxu0 0.0
      %764 = vmatprep.subr.mxu0 0.0
      %765 = vmatpush1.msra.mxu0 0.0
      %766 = vmatprep.subr.mxu0 0.0
      %767 = vmatpush1.msra.mxu0 0.0
      %768 = vmatprep.subr.mxu0 0.0
      %769 = vmatpush1.msra.mxu0 0.0
      %770 = vmatprep.subr.mxu0 0.0
      %771 = vmatpush1.msra.mxu0 0.0
      %772 = vmatprep.subr.mxu0 0.0
      %773 = vmatpush1.msra.mxu0 0.0
      %774 = vmatprep.subr.mxu0 0.0
      %775 = vmatpush1.msra.mxu0 0.0
      %776 = vmatprep.subr.mxu0 0.0
      %777 = vmatpush1.msra.mxu0 0.0
      %778 = vmatprep.subr.mxu0 0.0
      %779 = vmatpush1.msra.mxu0 0.0
      %780 = vmatprep.subr.mxu0 0.0
      %781 = vmatpush1.msra.mxu0 0.0
      %782 = vmatprep.subr.mxu0 0.0
      %783 = vmatpush1.msra.mxu0 0.0
      %784 = vmatprep.subr.mxu0 0.0
      %785 = vmatpush1.msra.mxu0 0.0
      %786 = vmatprep.subr.mxu0 0.0
      %787 = vmatpush1.msra.mxu0 0.0
      %788 = vmatprep.subr.mxu0 0.0
      %789 = vmatpush1.msra.mxu0 0.0
      %790 = vmatprep.subr.mxu0 0.0
      %791 = vmatpush1.msra.mxu0 0.0
      %792 = vmatprep.subr.mxu0 0.0
      %793 = vmatpush1.msra.mxu0 0.0
      %794 = vmatprep.subr.mxu0 0.0
      %795 = vmatpush1.msra.mxu0 0.0
      %796 = vmatprep.subr.mxu0 0.0
      %797 = vmatpush1.msra.mxu0 0.0
      %798 = vmatprep.subr.mxu0 0.0
      %799 = vmatpush1.msra.mxu0 0.0
      %800 = vmatprep.mubr.f32.mxu0 0.0
      %801 = vmatmul.mubr.f32.gmra.mrb[0].mxu0 %v457
      %v802 = vpop.f32.mrb[0].mxu0
      %v803 = vadd.f32 %v734, %v802
      %v804 = vpop.f32.mrb[0].mxu0
      %805 = vmatprep.mubr.f32.mxu0 0.0
      %806 = vmatmul.mubr.f32.gmra.mrb[0].mxu0 %v460
      %v807 = vpop.f32.mrb[0].mxu0
      %v808 = vadd.f32 %v734, %v807
      %v809 = vpop.f32.mrb[0].mxu0
      %810 = vdwg.mxu0
      %s811 = scalar_lea.vmem %s3, 128
      %v812 = vld [vmem:[%s811] sm:$0xff]
      %v813 = vld [vmem:[%s811 + $0x8] sm:$0xff]
      %v814 = vld [vmem:[%s811 + $0x10] sm:$0xff]
      %v815 = vld [vmem:[%s811 + $0x18] sm:$0xff]
      %v816 = vld [vmem:[%s811 + $0x20] sm:$0xff]
      %v817 = vld [vmem:[%s811 + $0x28] sm:$0xff]
      %v818 = vld [vmem:[%s811 + $0x30] sm:$0xff]
      %v819 = vld [vmem:[%s811 + $0x38] sm:$0xff]
      %v820 = vld [vmem:[%s811 + $0x40] sm:$0xff]
      %v821 = vld [vmem:[%s811 + $0x48] sm:$0xff]
      %v822 = vld [vmem:[%s811 + $0x50] sm:$0xff]
      %v823 = vld [vmem:[%s811 + $0x58] sm:$0xff]
      %v824 = vld [vmem:[%s811 + $0x60] sm:$0xff]
      %v825 = vld [vmem:[%s811 + $0x68] sm:$0xff]
      %v826 = vld [vmem:[%s811 + $0x70] sm:$0xff]
      %v827 = vld [vmem:[%s811 + $0x78] sm:$0xff]
      %828 = vmatprep.subr.mxu0 0.0
      %829 = vmatpush1.msra.mxu0 %v719
      %830 = vmatprep.subr.mxu0 0.0
      %831 = vmatpush1.msra.mxu0 %v720
      %832 = vmatprep.subr.mxu0 0.0
      %833 = vmatpush1.msra.mxu0 0.0
      %834 = vmatprep.subr.mxu0 0.0
      %835 = vmatpush1.msra.mxu0 0.0
      %836 = vmatprep.subr.mxu0 0.0
      %837 = vmatpush1.msra.mxu0 0.0
      %838 = vmatprep.subr.mxu0 0.0
      %839 = vmatpush1.msra.mxu0 0.0
      %840 = vmatprep.subr.mxu0 0.0
      %841 = vmatpush1.msra.mxu0 0.0
      %842 = vmatprep.subr.mxu0 0.0
      %843 = vmatpush1.msra.mxu0 0.0
      %844 = vmatprep.subr.mxu0 0.0
      %845 = vmatpush1.msra.mxu0 0.0
      %846 = vmatprep.subr.mxu0 0.0
      %847 = vmatpush1.msra.mxu0 0.0
      %848 = vmatprep.subr.mxu0 0.0
      %849 = vmatpush1.msra.mxu0 0.0
      %850 = vmatprep.subr.mxu0 0.0
      %851 = vmatpush1.msra.mxu0 0.0
      %852 = vmatprep.subr.mxu0 0.0
      %853 = vmatpush1.msra.mxu0 0.0
      %854 = vmatprep.subr.mxu0 0.0
      %855 = vmatpush1.msra.mxu0 0.0
      %856 = vmatprep.subr.mxu0 0.0
      %857 = vmatpush1.msra.mxu0 0.0
      %858 = vmatprep.subr.mxu0 0.0
      %859 = vmatpush1.msra.mxu0 0.0
      %860 = vmatprep.subr.mxu0 0.0
      %861 = vmatpush1.msra.mxu0 0.0
      %862 = vmatprep.subr.mxu0 0.0
      %863 = vmatpush1.msra.mxu0 0.0
      %864 = vmatprep.subr.mxu0 0.0
      %865 = vmatpush1.msra.mxu0 0.0
      %866 = vmatprep.subr.mxu0 0.0
      %867 = vmatpush1.msra.mxu0 0.0
      %868 = vmatprep.subr.mxu0 0.0
      %869 = vmatpush1.msra.mxu0 0.0
      %870 = vmatprep.subr.mxu0 0.0
      %871 = vmatpush1.msra.mxu0 0.0
      %872 = vmatprep.subr.mxu0 0.0
      %873 = vmatpush1.msra.mxu0 0.0
      %874 = vmatprep.subr.mxu0 0.0
      %875 = vmatpush1.msra.mxu0 0.0
      %876 = vmatprep.subr.mxu0 0.0
      %877 = vmatpush1.msra.mxu0 0.0
      %878 = vmatprep.subr.mxu0 0.0
      %879 = vmatpush1.msra.mxu0 0.0
      %880 = vmatprep.subr.mxu0 0.0
      %881 = vmatpush1.msra.mxu0 0.0
      %882 = vmatprep.subr.mxu0 0.0
      %883 = vmatpush1.msra.mxu0 0.0
      %884 = vmatprep.subr.mxu0 0.0
      %885 = vmatpush1.msra.mxu0 0.0
      %886 = vmatprep.subr.mxu0 0.0
      %887 = vmatpush1.msra.mxu0 0.0
      %888 = vmatprep.subr.mxu0 0.0
      %889 = vmatpush1.msra.mxu0 0.0
      %890 = vmatprep.subr.mxu0 0.0
      %891 = vmatpush1.msra.mxu0 0.0
      %892 = vmatprep.mubr.f32.mxu0 0.0
      %893 = vmatmul.mubr.f32.gmra.mrb[0].mxu0 %v286
      %v894 = vpop.f32.mrb[0].mxu0
      %v895 = vadd.f32 0.0, %v894
      %v896 = vpop.f32.mrb[0].mxu0
      %897 = vmatprep.mubr.f32.mxu0 0.0
      %898 = vmatmul.mubr.f32.gmra.mrb[0].mxu0 %v289
      %v899 = vpop.f32.mrb[0].mxu0
      %v900 = vadd.f32 0.0, %v899
      %v901 = vpop.f32.mrb[0].mxu0
      %902 = vdwg.mxu0
      %v903 = vld [vmem:[%s3] sm:$0xff]
      %v904 = vld [vmem:[%s3 + $0x8] sm:$0xff]
      %v905 = vld [vmem:[%s3 + $0x10] sm:$0xff]
      %v906 = vld [vmem:[%s3 + $0x18] sm:$0xff]
      %v907 = vld [vmem:[%s3 + $0x20] sm:$0xff]
      %v908 = vld [vmem:[%s3 + $0x28] sm:$0xff]
      %v909 = vld [vmem:[%s3 + $0x30] sm:$0xff]
      %v910 = vld [vmem:[%s3 + $0x38] sm:$0xff]
      %v911 = vld [vmem:[%s3 + $0x40] sm:$0xff]
      %v912 = vld [vmem:[%s3 + $0x48] sm:$0xff]
      %v913 = vld [vmem:[%s3 + $0x50] sm:$0xff]
      %v914 = vld [vmem:[%s3 + $0x58] sm:$0xff]
      %v915 = vld [vmem:[%s3 + $0x60] sm:$0xff]
      %v916 = vld [vmem:[%s3 + $0x68] sm:$0xff]
      %v917 = vld [vmem:[%s3 + $0x70] sm:$0xff]
      %v918 = vld [vmem:[%s3 + $0x78] sm:$0xff]
      %919 = vmatprep.subr.mxu0 0.0
      %920 = vmatpush1.msra.mxu0 %v903
      %921 = vmatprep.subr.mxu0 0.0
      %922 = vmatpush1.msra.mxu0 %v904
      %923 = vmatprep.subr.mxu0 0.0
      %924 = vmatpush1.msra.mxu0 %v905
      %925 = vmatprep.subr.mxu0 0.0
      %926 = vmatpush1.msra.mxu0 %v906
      %927 = vmatprep.subr.mxu0 0.0
      %928 = vmatpush1.msra.mxu0 %v907
      %929 = vmatprep.subr.mxu0 0.0
      %930 = vmatpush1.msra.mxu0 %v908
      %931 = vmatprep.subr.mxu0 0.0
      %932 = vmatpush1.msra.mxu0 %v909
      %933 = vmatprep.subr.mxu0 0.0
      %934 = vmatpush1.msra.mxu0 %v910
      %935 = vmatprep.subr.mxu0 0.0
      %936 = vmatpush1.msra.mxu0 %v911
      %937 = vmatprep.subr.mxu0 0.0
      %938 = vmatpush1.msra.mxu0 %v912
      %939 = vmatprep.subr.mxu0 0.0
      %940 = vmatpush1.msra.mxu0 %v913
      %941 = vmatprep.subr.mxu0 0.0
      %942 = vmatpush1.msra.mxu0 %v914
      %943 = vmatprep.subr.mxu0 0.0
      %944 = vmatpush1.msra.mxu0 %v915
      %945 = vmatprep.subr.mxu0 0.0
      %946 = vmatpush1.msra.mxu0 %v916
      %947 = vmatprep.subr.mxu0 0.0
      %948 = vmatpush1.msra.mxu0 %v917
      %949 = vmatprep.subr.mxu0 0.0
      %950 = vmatpush1.msra.mxu0 %v918
      %951 = vmatprep.subr.mxu0 0.0
      %952 = vmatpush1.msra.mxu0 0.0
      %953 = vmatprep.subr.mxu0 0.0
      %954 = vmatpush1.msra.mxu0 0.0
      %955 = vmatprep.subr.mxu0 0.0
      %956 = vmatpush1.msra.mxu0 0.0
      %957 = vmatprep.subr.mxu0 0.0
      %958 = vmatpush1.msra.mxu0 0.0
      %959 = vmatprep.subr.mxu0 0.0
      %960 = vmatpush1.msra.mxu0 0.0
      %961 = vmatprep.subr.mxu0 0.0
      %962 = vmatpush1.msra.mxu0 0.0
      %963 = vmatprep.subr.mxu0 0.0
      %964 = vmatpush1.msra.mxu0 0.0
      %965 = vmatprep.subr.mxu0 0.0
      %966 = vmatpush1.msra.mxu0 0.0
      %967 = vmatprep.subr.mxu0 0.0
      %968 = vmatpush1.msra.mxu0 0.0
      %969 = vmatprep.subr.mxu0 0.0
      %970 = vmatpush1.msra.mxu0 0.0
      %971 = vmatprep.subr.mxu0 0.0
      %972 = vmatpush1.msra.mxu0 0.0
      %973 = vmatprep.subr.mxu0 0.0
      %974 = vmatpush1.msra.mxu0 0.0
      %975 = vmatprep.subr.mxu0 0.0
      %976 = vmatpush1.msra.mxu0 0.0
      %977 = vmatprep.subr.mxu0 0.0
      %978 = vmatpush1.msra.mxu0 0.0
      %979 = vmatprep.subr.mxu0 0.0
      %980 = vmatpush1.msra.mxu0 0.0
      %981 = vmatprep.subr.mxu0 0.0
      %982 = vmatpush1.msra.mxu0 0.0
      %983 = vmatprep.mubr.f32.mxu0 0.0
      %984 = vmatmul.mubr.f32.gmra.mrb[0].mxu0 %v895
      %v985 = vpop.f32.mrb[0].mxu0
      %v986 = vadd.f32 0.0, %v985
      %v987 = vpop.f32.mrb[0].mxu0
      %988 = vmatprep.mubr.f32.mxu0 0.0
      %989 = vmatmul.mubr.f32.gmra.mrb[0].mxu0 %v900
      %v990 = vpop.f32.mrb[0].mxu0
      %v991 = vadd.f32 0.0, %v990
      %v992 = vpop.f32.mrb[0].mxu0
      %993 = vdwg.mxu0
      %994 = vmatprep.subr.mxu0 0.0
      %995 = vmatpush1.msra.mxu0 %v812
      %996 = vmatprep.subr.mxu0 0.0
      %997 = vmatpush1.msra.mxu0 %v813
      %998 = vmatprep.subr.mxu0 0.0
      %999 = vmatpush1.msra.mxu0 %v814
      %1000 = vmatprep.subr.mxu0 0.0
      %1001 = vmatpush1.msra.mxu0 %v815
      %1002 = vmatprep.subr.mxu0 0.0
      %1003 = vmatpush1.msra.mxu0 %v816
      %1004 = vmatprep.subr.mxu0 0.0
      %1005 = vmatpush1.msra.mxu0 %v817
      %1006 = vmatprep.subr.mxu0 0.0
      %1007 = vmatpush1.msra.mxu0 %v818
      %1008 = vmatprep.subr.mxu0 0.0
      %1009 = vmatpush1.msra.mxu0 %v819
      %1010 = vmatprep.subr.mxu0 0.0
      %1011 = vmatpush1.msra.mxu0 %v820
      %1012 = vmatprep.subr.mxu0 0.0
      %1013 = vmatpush1.msra.mxu0 %v821
      %1014 = vmatprep.subr.mxu0 0.0
      %1015 = vmatpush1.msra.mxu0 %v822
      %1016 = vmatprep.subr.mxu0 0.0
      %1017 = vmatpush1.msra.mxu0 %v823
      %1018 = vmatprep.subr.mxu0 0.0
      %1019 = vmatpush1.msra.mxu0 %v824
      %1020 = vmatprep.subr.mxu0 0.0
      %1021 = vmatpush1.msra.mxu0 %v825
      %1022 = vmatprep.subr.mxu0 0.0
      %1023 = vmatpush1.msra.mxu0 %v826
      %1024 = vmatprep.subr.mxu0 0.0
      %1025 = vmatpush1.msra.mxu0 %v827
      %1026 = vmatprep.subr.mxu0 0.0
      %1027 = vmatpush1.msra.mxu0 0.0
      %1028 = vmatprep.subr.mxu0 0.0
      %1029 = vmatpush1.msra.mxu0 0.0
      %1030 = vmatprep.subr.mxu0 0.0
      %1031 = vmatpush1.msra.mxu0 0.0
      %1032 = vmatprep.subr.mxu0 0.0
      %1033 = vmatpush1.msra.mxu0 0.0
      %1034 = vmatprep.subr.mxu0 0.0
      %1035 = vmatpush1.msra.mxu0 0.0
      %1036 = vmatprep.subr.mxu0 0.0
      %1037 = vmatpush1.msra.mxu0 0.0
      %1038 = vmatprep.subr.mxu0 0.0
      %1039 = vmatpush1.msra.mxu0 0.0
      %1040 = vmatprep.subr.mxu0 0.0
      %1041 = vmatpush1.msra.mxu0 0.0
      %1042 = vmatprep.subr.mxu0 0.0
      %1043 = vmatpush1.msra.mxu0 0.0
      %1044 = vmatprep.subr.mxu0 0.0
      %1045 = vmatpush1.msra.mxu0 0.0
      %1046 = vmatprep.subr.mxu0 0.0
      %1047 = vmatpush1.msra.mxu0 0.0
      %1048 = vmatprep.subr.mxu0 0.0
      %1049 = vmatpush1.msra.mxu0 0.0
      %1050 = vmatprep.subr.mxu0 0.0
      %1051 = vmatpush1.msra.mxu0 0.0
      %1052 = vmatprep.subr.mxu0 0.0
      %1053 = vmatpush1.msra.mxu0 0.0
      %1054 = vmatprep.subr.mxu0 0.0
      %1055 = vmatpush1.msra.mxu0 0.0
      %1056 = vmatprep.subr.mxu0 0.0
      %1057 = vmatpush1.msra.mxu0 0.0
      %1058 = vmatprep.mubr.f32.mxu0 0.0
      %1059 = vmatmul.mubr.f32.gmra.mrb[0].mxu0 %v719
      %v1060 = vpop.f32.mrb[0].mxu0
      %v1061 = vadd.f32 %v986, %v1060
      %v1062 = vpop.f32.mrb[0].mxu0
      %1063 = vmatprep.mubr.f32.mxu0 0.0
      %1064 = vmatmul.mubr.f32.gmra.mrb[0].mxu0 %v720
      %v1065 = vpop.f32.mrb[0].mxu0
      %v1066 = vadd.f32 %v991, %v1065
      %v1067 = vpop.f32.mrb[0].mxu0
      %1068 = vdwg.mxu0
      %1069 = vmatprep.subr.mxu0 0.0
      %1070 = vmatpush1.msra.mxu0 %v719
      %1071 = vmatprep.subr.mxu0 0.0
      %1072 = vmatpush1.msra.mxu0 %v720
      %1073 = vmatprep.subr.mxu0 0.0
      %1074 = vmatpush1.msra.mxu0 0.0
      %1075 = vmatprep.subr.mxu0 0.0
      %1076 = vmatpush1.msra.mxu0 0.0
      %1077 = vmatprep.subr.mxu0 0.0
      %1078 = vmatpush1.msra.mxu0 0.0
      %1079 = vmatprep.subr.mxu0 0.0
      %1080 = vmatpush1.msra.mxu0 0.0
      %1081 = vmatprep.subr.mxu0 0.0
      %1082 = vmatpush1.msra.mxu0 0.0
      %1083 = vmatprep.subr.mxu0 0.0
      %1084 = vmatpush1.msra.mxu0 0.0
      %1085 = vmatprep.subr.mxu0 0.0
      %1086 = vmatpush1.msra.mxu0 0.0
      %1087 = vmatprep.subr.mxu0 0.0
      %1088 = vmatpush1.msra.mxu0 0.0
      %1089 = vmatprep.subr.mxu0 0.0
      %1090 = vmatpush1.msra.mxu0 0.0
      %1091 = vmatprep.subr.mxu0 0.0
      %1092 = vmatpush1.msra.mxu0 0.0
      %1093 = vmatprep.subr.mxu0 0.0
      %1094 = vmatpush1.msra.mxu0 0.0
      %1095 = vmatprep.subr.mxu0 0.0
      %1096 = vmatpush1.msra.mxu0 0.0
      %1097 = vmatprep.subr.mxu0 0.0
      %1098 = vmatpush1.msra.mxu0 0.0
      %1099 = vmatprep.subr.mxu0 0.0
      %1100 = vmatpush1.msra.mxu0 0.0
      %1101 = vmatprep.subr.mxu0 0.0
      %1102 = vmatpush1.msra.mxu0 0.0
      %1103 = vmatprep.subr.mxu0 0.0
      %1104 = vmatpush1.msra.mxu0 0.0
      %1105 = vmatprep.subr.mxu0 0.0
      %1106 = vmatpush1.msra.mxu0 0.0
      %1107 = vmatprep.subr.mxu0 0.0
      %1108 = vmatpush1.msra.mxu0 0.0
      %1109 = vmatprep.subr.mxu0 0.0
      %1110 = vmatpush1.msra.mxu0 0.0
      %1111 = vmatprep.subr.mxu0 0.0
      %1112 = vmatpush1.msra.mxu0 0.0
      %1113 = vmatprep.subr.mxu0 0.0
      %1114 = vmatpush1.msra.mxu0 0.0
      %1115 = vmatprep.subr.mxu0 0.0
      %1116 = vmatpush1.msra.mxu0 0.0
      %1117 = vmatprep.subr.mxu0 0.0
      %1118 = vmatpush1.msra.mxu0 0.0
      %1119 = vmatprep.subr.mxu0 0.0
      %1120 = vmatpush1.msra.mxu0 0.0
      %1121 = vmatprep.subr.mxu0 0.0
      %1122 = vmatpush1.msra.mxu0 0.0
      %1123 = vmatprep.subr.mxu0 0.0
      %1124 = vmatpush1.msra.mxu0 0.0
      %1125 = vmatprep.subr.mxu0 0.0
      %1126 = vmatpush1.msra.mxu0 0.0
      %1127 = vmatprep.subr.mxu0 0.0
      %1128 = vmatpush1.msra.mxu0 0.0
      %1129 = vmatprep.subr.mxu0 0.0
      %1130 = vmatpush1.msra.mxu0 0.0
      %1131 = vmatprep.subr.mxu0 0.0
      %1132 = vmatpush1.msra.mxu0 0.0
      %1133 = vmatprep.mubr.f32.mxu0 0.0
      %1134 = vmatmul.mubr.f32.gmra.mrb[0].mxu0 %v538
      %v1135 = vpop.f32.mrb[0].mxu0
      %v1136 = vadd.f32 0.0, %v1135
      %v1137 = vpop.f32.mrb[0].mxu0
      %1138 = vmatprep.mubr.f32.mxu0 0.0
      %1139 = vmatmul.mubr.f32.gmra.mrb[0].mxu0 %v541
      %v1140 = vpop.f32.mrb[0].mxu0
      %v1141 = vadd.f32 0.0, %v1140
      %v1142 = vpop.f32.mrb[0].mxu0
      %1143 = vdwg.mxu0
      %s1144 = scalar_lea.vmem %s3, 256
      %v1145 = vld [vmem:[%s1144] sm:$0xff]
      %v1146 = vld [vmem:[%s1144 + $0x8] sm:$0xff]
      %v1147 = vld [vmem:[%s1144 + $0x10] sm:$0xff]
      %v1148 = vld [vmem:[%s1144 + $0x18] sm:$0xff]
      %v1149 = vld [vmem:[%s1144 + $0x20] sm:$0xff]
      %v1150 = vld [vmem:[%s1144 + $0x28] sm:$0xff]
      %v1151 = vld [vmem:[%s1144 + $0x30] sm:$0xff]
      %v1152 = vld [vmem:[%s1144 + $0x38] sm:$0xff]
      %v1153 = vld [vmem:[%s1144 + $0x40] sm:$0xff]
      %v1154 = vld [vmem:[%s1144 + $0x48] sm:$0xff]
      %v1155 = vld [vmem:[%s1144 + $0x50] sm:$0xff]
      %v1156 = vld [vmem:[%s1144 + $0x58] sm:$0xff]
      %v1157 = vld [vmem:[%s1144 + $0x60] sm:$0xff]
      %v1158 = vld [vmem:[%s1144 + $0x68] sm:$0xff]
      %v1159 = vld [vmem:[%s1144 + $0x70] sm:$0xff]
      %v1160 = vld [vmem:[%s1144 + $0x78] sm:$0xff]
      %1161 = vmatprep.subr.mxu0 0.0
      %1162 = vmatpush1.msra.mxu0 %v1145
      %1163 = vmatprep.subr.mxu0 0.0
      %1164 = vmatpush1.msra.mxu0 %v1146
      %1165 = vmatprep.subr.mxu0 0.0
      %1166 = vmatpush1.msra.mxu0 %v1147
      %1167 = vmatprep.subr.mxu0 0.0
      %1168 = vmatpush1.msra.mxu0 %v1148
      %1169 = vmatprep.subr.mxu0 0.0
      %1170 = vmatpush1.msra.mxu0 %v1149
      %1171 = vmatprep.subr.mxu0 0.0
      %1172 = vmatpush1.msra.mxu0 %v1150
      %1173 = vmatprep.subr.mxu0 0.0
      %1174 = vmatpush1.msra.mxu0 %v1151
      %1175 = vmatprep.subr.mxu0 0.0
      %1176 = vmatpush1.msra.mxu0 %v1152
      %1177 = vmatprep.subr.mxu0 0.0
      %1178 = vmatpush1.msra.mxu0 %v1153
      %1179 = vmatprep.subr.mxu0 0.0
      %1180 = vmatpush1.msra.mxu0 %v1154
      %1181 = vmatprep.subr.mxu0 0.0
      %1182 = vmatpush1.msra.mxu0 %v1155
      %1183 = vmatprep.subr.mxu0 0.0
      %1184 = vmatpush1.msra.mxu0 %v1156
      %1185 = vmatprep.subr.mxu0 0.0
      %1186 = vmatpush1.msra.mxu0 %v1157
      %1187 = vmatprep.subr.mxu0 0.0
      %1188 = vmatpush1.msra.mxu0 %v1158
      %1189 = vmatprep.subr.mxu0 0.0
      %1190 = vmatpush1.msra.mxu0 %v1159
      %1191 = vmatprep.subr.mxu0 0.0
      %1192 = vmatpush1.msra.mxu0 %v1160
      %1193 = vmatprep.subr.mxu0 0.0
      %1194 = vmatpush1.msra.mxu0 0.0
      %1195 = vmatprep.subr.mxu0 0.0
      %1196 = vmatpush1.msra.mxu0 0.0
      %1197 = vmatprep.subr.mxu0 0.0
      %1198 = vmatpush1.msra.mxu0 0.0
      %1199 = vmatprep.subr.mxu0 0.0
      %1200 = vmatpush1.msra.mxu0 0.0
      %1201 = vmatprep.subr.mxu0 0.0
      %1202 = vmatpush1.msra.mxu0 0.0
      %1203 = vmatprep.subr.mxu0 0.0
      %1204 = vmatpush1.msra.mxu0 0.0
      %1205 = vmatprep.subr.mxu0 0.0
      %1206 = vmatpush1.msra.mxu0 0.0
      %1207 = vmatprep.subr.mxu0 0.0
      %1208 = vmatpush1.msra.mxu0 0.0
      %1209 = vmatprep.subr.mxu0 0.0
      %1210 = vmatpush1.msra.mxu0 0.0
      %1211 = vmatprep.subr.mxu0 0.0
      %1212 = vmatpush1.msra.mxu0 0.0
      %1213 = vmatprep.subr.mxu0 0.0
      %1214 = vmatpush1.msra.mxu0 0.0
      %1215 = vmatprep.subr.mxu0 0.0
      %1216 = vmatpush1.msra.mxu0 0.0
      %1217 = vmatprep.subr.mxu0 0.0
      %1218 = vmatpush1.msra.mxu0 0.0
      %1219 = vmatprep.subr.mxu0 0.0
      %1220 = vmatpush1.msra.mxu0 0.0
      %1221 = vmatprep.subr.mxu0 0.0
      %1222 = vmatpush1.msra.mxu0 0.0
      %1223 = vmatprep.subr.mxu0 0.0
      %1224 = vmatpush1.msra.mxu0 0.0
      %1225 = vmatprep.mubr.f32.mxu0 0.0
      %1226 = vmatmul.mubr.f32.gmra.mrb[0].mxu0 %v1136
      %v1227 = vpop.f32.mrb[0].mxu0
      %v1228 = vadd.f32 0.0, %v1227
      %v1229 = vpop.f32.mrb[0].mxu0
      %1230 = vmatprep.mubr.f32.mxu0 0.0
      %1231 = vmatmul.mubr.f32.gmra.mrb[0].mxu0 %v1141
      %v1232 = vpop.f32.mrb[0].mxu0
      %v1233 = vadd.f32 0.0, %v1232
      %v1234 = vpop.f32.mrb[0].mxu0
      %1235 = vdwg.mxu0
      %v1236 = vadd.f32 %v1061, %v1228
      %v1237 = vadd.f32 %v1066, %v1233
      %v1238 = vadd.f32 %v803, %v1236
      %v1239 = vadd.f32 %v808, %v1237
      %1240 = vst [vmem:[%s251] sm:$0xff] %v1238
      %1241 = vst [vmem:[%s251 + $0x8] sm:$0xff] %v1239
      %p1242 = scmp.lt.s32.totalorder %s17, 1
      %s1243 = scalar_select %p1242, %s17, 1
      %s1244 = smul.addr %s1243, 2
      %s1245 = smul.addr %s1244, 8
      %s1246 = scalar_lea.vmem %s6, %s1245
      // Predicated region
      $region45: #{dblock_forward.1} parent=43 // pred_check
        %p1247 = pneg %p166
      $region46: #{dblock_forward.1} parent=43 // pred_check_branch
        %1249 = sbr.rel (%p1247) target = $region48
      $region47: #{dblock_forward.1} parent=43 // pred_region
        _
      $region48: #{dblock_forward.1} parent=43 // pred_fallthru
        _
    $region44: #{dblock_forward.1} parent=5 // pred_fallthru
      _
    %p1250 = scmp.le.s32.totalorder 2, %s12
    // Predicated region
    $region49: #{dblock_forward.1} parent=5 // pred_check
      %p1251 = pneg %p1250
    $region50: #{dblock_forward.1} parent=5 // pred_check_branch
      %1253 = sbr.rel (%p1251) target = $region52
    $region51: #{dblock_forward.1} parent=5 // pred_region
      %s1254 = ssub.s32 %s12, 2
      // Predicated region
      $region53: #{dblock_forward.1} parent=51 // pred_check
        %p1255 = pneg %p172
      $region54: #{dblock_forward.1} parent=51 // pred_check_branch
        %1257 = sbr.rel (%p1255) target = $region56
      $region55: #{dblock_forward.1} parent=51 // pred_region
        %p1258 = scmp.lt.s32.totalorder %s18, 1
        %s1259 = scalar_select %p1258, %s18, 1
        %s1260 = smul.addr %s1259, 2
        %s1261 = smul.addr %s1260, 8
        %s1262 = scalar_lea.vmem %s6, %s1261
      $region56: #{dblock_forward.1} parent=51 // pred_fallthru
        _
    $region52: #{dblock_forward.1} parent=5 // pred_fallthru
      _
  $region6: #{dblock_forward.1} parent=0 // loop_footer
    %s16 = sadd.s32 1, %s12
  $region7: #{dblock_forward.1} parent=0 // loop_footer_branch
    %11 = sbr.rel target = $region3
  $region8: #{dblock_forward.1} parent=0 // loop_exit
    _

</llo_original>
